<compile_context>
chip_gen: v7x
topology: tpu7x:2x2x1
jax: 0.10.0
libtpu: 0.0.40
codegen_flags: <defaults>
</compile_context>

<pallas_src>
from functools import partial

import jax
import jax.numpy as jnp
from jax.experimental import pallas as pl
from jax.experimental.pallas import tpu as pltpu

# ---- small stand-in sizes (module uses DIM=2048, MID=10000, H=W=7; scaled down) ----
B = 8          # batch
DIM = 256      # backbone feature dim (stands in for 2048)
MID = 512      # classifier hidden width (stands in for 10000)
NC = 16        # args.nc
N_LAYERS = 2   # args.layers
H = W = 4      # trunk output spatial size
BN_EPS = 1e-5

MAX_TK = 1024  # K-tile cap (multiple of 128)
MAX_TN = 2048  # N-tile cap (multiple of 128); keeps weight blocks VMEM-friendly on v7x


def _round_up(x, m):
    return (x + m - 1) // m * m


# ---------------------------------------------------------------------------
# Fused Linear (+ optional BatchNorm1d affine + ReLU) kernel.
#   y = [relu]( (x @ W + b) * scale + shift )
# grid = (N-tiles, K-tiles); K (reduction) is the inner, "arbitrary" axis.
# The f32 output block is revisited across K and used directly as the accumulator.
# ---------------------------------------------------------------------------
def linear_kernel(x_ref, w_ref, b_ref, scale_ref, shift_ref, o_ref, *, apply_bn_relu):
    k = pl.program_id(1)

    @pl.when(k == 0)
    def _():
        o_ref[...] = jnp.zeros_like(o_ref)

    # bf16 operands, f32 MXU accumulation straight into the output block.
    o_ref[...] += jnp.dot(x_ref[...], w_ref[...], preferred_element_type=jnp.float32)

    @pl.when(k == pl.num_programs(1) - 1)
    def _():
        y = o_ref[...] + b_ref[...]
        if apply_bn_relu:
            y = y * scale_ref[...] + shift_ref[...]
            y = jnp.maximum(y, 0.0)
        o_ref[...] = y


def linear_layer(x, w, b, scale, shift, *, apply_bn_relu):
    bsz, kdim = x.shape
    kdim_w, ndim = w.shape
    assert kdim_w == kdim

    # Tile selection + padding (no divisibility requirements on the real shapes).
    bpad = _round_up(bsz, 8)
    tk = min(_round_up(kdim, 128), MAX_TK)
    kpad = _round_up(kdim, tk)
    tn = min(_round_up(ndim, 128), MAX_TN)
    npad = _round_up(ndim, tn)
    nk = kpad // tk
    nn = npad // tn

    xb = x.astype(jnp.bfloat16)
    wb = w.astype(jnp.bfloat16)
    if (bpad, kpad) != (bsz, kdim):
        xb = jnp.pad(xb, ((0, bpad - bsz), (0, kpad - kdim)))
    if (kpad, npad) != (kdim, ndim):
        wb = jnp.pad(wb, ((0, kpad - kdim), (0, npad - ndim)))

    def pad_n(v):
        return jnp.pad(v, ((0, 0), (0, npad - ndim))) if npad != ndim else v

    bp, sp, shp = pad_n(b), pad_n(scale), pad_n(shift)

    # Explicit VMEM budget (double-buffered inputs + f32 output tile), with headroom.
    est = (2 * bpad * tk * 2          # x tile (bf16)
           + 2 * tk * tn * 2          # weight tile (bf16)
           + 2 * bpad * tn * 4        # output/accumulator tile (f32)
           + 2 * 3 * 8 * tn * 4)      # bias / scale / shift (sublane-padded)
    vmem_limit = min(max(2 * est, 32 * 1024 * 1024), 64 * 1024 * 1024)

    kernel = partial(linear_kernel, apply_bn_relu=apply_bn_relu)
    out = pl.pallas_call(
        kernel,
        out_shape=jax.ShapeDtypeStruct((bpad, npad), jnp.float32),
        grid_spec=pltpu.PrefetchScalarGridSpec(
            num_scalar_prefetch=0,
            grid=(nn, nk),
            in_specs=[
                pl.BlockSpec((bpad, tk), lambda n, k: (0, k)),   # x (tiny per-step slab)
                pl.BlockSpec((tk, tn), lambda n, k: (k, n)),     # weight stripe
                pl.BlockSpec((1, tn), lambda n, k: (0, n)),      # bias
                pl.BlockSpec((1, tn), lambda n, k: (0, n)),      # BN scale
                pl.BlockSpec((1, tn), lambda n, k: (0, n)),      # BN shift
            ],
            out_specs=pl.BlockSpec((bpad, tn), lambda n, k: (0, n)),
        ),
        compiler_params=pltpu.CompilerParams(
            dimension_semantics=("parallel", "arbitrary"),
            vmem_limit_bytes=vmem_limit),
    )(xb, wb, bp, sp, shp)
    return out[:bsz, :ndim]


# ---------------------------------------------------------------------------
# Parameter construction (deterministic, matches the module's init statistics)
#   Linear: weight ~ N(0, 0.01), bias ~ N(0, 0.01)   (weights stored bf16 for the MXU)
#   BatchNorm1d: gamma ~ N(1, 0.01), beta = 0, running_mean = 0, running_var = 1
# ---------------------------------------------------------------------------
def make_classifier_params(key):
    dims = [DIM] + [MID] * N_LAYERS
    hidden = []
    for i in range(N_LAYERS):
        key, kw, kb, kg = jax.random.split(key, 4)
        in_d, out_d = dims[i], dims[i + 1]
        w = (0.01 * jax.random.normal(kw, (in_d, out_d), jnp.float32)).astype(jnp.bfloat16)
        b = 0.01 * jax.random.normal(kb, (1, out_d), jnp.float32)
        gamma = 1.0 + 0.01 * jax.random.normal(kg, (1, out_d), jnp.float32)
        beta = jnp.zeros((1, out_d), jnp.float32)
        # eval-mode BN with running_mean=0, running_var=1:
        scale = gamma / jnp.sqrt(1.0 + BN_EPS)
        shift = beta
        hidden.append((w, b, scale, shift))
    key, kw, kb = jax.random.split(key, 3)
    wf = (0.01 * jax.random.normal(kw, (MID, NC), jnp.float32)).astype(jnp.bfloat16)
    bf = 0.01 * jax.random.normal(kb, (1, NC), jnp.float32)
    return {"hidden": hidden, "final": (wf, bf)}


def classifier(g, params):
    h = g
    for (w, b, scale, shift) in params["hidden"]:
        # Dropout(p=0.5) is identity in eval mode.
        h = linear_layer(h, w, b, scale, shift, apply_bn_relu=True)
    wf, bf = params["final"]
    ones = jnp.ones((1, NC), jnp.float32)
    zeros = jnp.zeros((1, NC), jnp.float32)
    return linear_layer(h, wf, bf, ones, zeros, apply_bn_relu=False)


def model_forward(feat_nchw, params):
    b, c, h, w = feat_nchw.shape
    # gen's AdaptiveAvgPool2d + view -> [B, DIM].  Done in plain XLA: a standalone
    # Pallas GAP kernel is lane-sparse (HW << 128) launch overhead for ~MBs of data.
    g = jnp.mean(feat_nchw.reshape(b, c, h * w), axis=-1)
    f = classifier(g, params)
    # cls1 and cls2 share parameters in the reference module → f1 == f2; compute once.
    return f, f


# ---------------------------------------------------------------------------
# Pure-JAX reference for correctness checking (same bf16 weights, f32 math)
# ---------------------------------------------------------------------------
def reference_forward(feat_nchw, params):
    g = feat_nchw.reshape(feat_nchw.shape[0], feat_nchw.shape[1], -1).mean(-1)
    h = g
    for (w, b, scale, shift) in params["hidden"]:
        h = jnp.maximum((h @ w.astype(jnp.float32) + b) * scale + shift, 0.0)
    wf, bf = params["final"]
    out = h @ wf.astype(jnp.float32) + bf
    return out, out


if __name__ == "__main__":
    key = jax.random.PRNGKey(0)
    kx, kp = jax.random.split(key)
    # input: trunk output feature map, NCHW
    x = jax.random.normal(kx, (B, DIM, H, W), jnp.float32)
    params = make_classifier_params(kp)

    f1, f2 = jax.block_until_ready(jax.jit(model_forward)(x, params))

    r1, r2 = reference_forward(x, params)
    assert f1.shape == (B, NC) and f2.shape == (B, NC)
    # bf16 matmul operands with f32 accumulation → loose-ish tolerance vs f32 reference.
    assert jnp.allclose(f1, r1, atol=2e-2, rtol=2e-2), float(jnp.max(jnp.abs(f1 - r1)))
    assert jnp.allclose(f2, r2, atol=2e-2, rtol=2e-2)
    assert jnp.allclose(f1, f2)  # cls1 and cls2 share parameters in the reference module

    print("KERNEL_OK")
</pallas_src>

<mosaic_0001>
module attributes {stable_mosaic.version = 11 : i64} {
  func.func @linear_kernel(%arg0: i32, %arg1: i32, %arg2: memref<8x256xbf16, #tpu.memory_space<vmem>>, %arg3: memref<256x512xbf16, #tpu.memory_space<vmem>>, %arg4: memref<1x512xf32, #tpu.memory_space<vmem>>, %arg5: memref<1x512xf32, #tpu.memory_space<vmem>>, %arg6: memref<1x512xf32, #tpu.memory_space<vmem>>, %arg7: memref<8x512xf32, #tpu.memory_space<vmem>>) attributes {dimension_semantics = [#tpu.dimension_semantics<parallel>, #tpu.dimension_semantics<arbitrary>], iteration_bounds = array<i64: 1, 1>, scalar_prefetch = 0 : i64, scratch_operands = 0 : i64, tpu.core_type = #tpu.core_type<tc>, window_params = [{transform_indices = @transform_0, window_bounds = array<i64: 8, 256>}, {transform_indices = @transform_1, window_bounds = array<i64: 256, 512>}, {transform_indices = @transform_2, window_bounds = array<i64: 1, 512>}, {transform_indices = @transform_3, window_bounds = array<i64: 1, 512>}, {transform_indices = @transform_4, window_bounds = array<i64: 1, 512>}, {transform_indices = @transform_5, window_bounds = array<i64: 8, 512>}]} {
    %c0_i32 = arith.constant 0 : i32
    %0 = arith.cmpi eq, %arg1, %c0_i32 : i32
    %1 = arith.extui %0 : i1 to i32
    %c0_i32_0 = arith.constant 0 : i32
    %2 = arith.cmpi ne, %1, %c0_i32_0 : i32
    scf.if %2 {
      %cst_10 = arith.constant 0.000000e+00 : f32
      %12 = vector.broadcast %cst_10 : f32 to vector<8x512xf32>
      %c0_11 = arith.constant 0 : index
      %c0_12 = arith.constant 0 : index
      %13 = vector.load %arg7[%c0_11, %c0_12] : memref<8x512xf32, #tpu.memory_space<vmem>>, vector<8x512xf32>
      tpu.vector_store %arg7[%c0_11, %c0_12], %12 {strides = array<i32>} : memref<8x512xf32, #tpu.memory_space<vmem>>, vector<8x512xf32>,
    } else {
    }
    %c0 = arith.constant 0 : index
    %c0_1 = arith.constant 0 : index
    %3 = vector.load %arg7[%c0, %c0_1] : memref<8x512xf32, #tpu.memory_space<vmem>>, vector<8x512xf32>
    %c0_2 = arith.constant 0 : index
    %c0_3 = arith.constant 0 : index
    %4 = vector.load %arg2[%c0_2, %c0_3] : memref<8x256xbf16, #tpu.memory_space<vmem>>, vector<8x256xbf16>
    %c0_4 = arith.constant 0 : index
    %c0_5 = arith.constant 0 : index
    %5 = vector.load %arg3[%c0_4, %c0_5] : memref<256x512xbf16, #tpu.memory_space<vmem>>, vector<256x512xbf16>
    %cst = arith.constant dense<0.000000e+00> : vector<8x512xf32>
    %6 = tpu.matmul %4, %5, %cst {dimension_numbers = #tpu.dot_dimension_numbers<[1], [0], [0], [1], [0, 0, 1, 1], [], []>} : vector<8x256xbf16>, vector<256x512xbf16>, vector<8x512xf32> -> vector<8x512xf32>
    %7 = arith.addf %3, %6 : vector<8x512xf32>
    %c0_6 = arith.constant 0 : index
    %c0_7 = arith.constant 0 : index
    %8 = vector.load %arg7[%c0_6, %c0_7] : memref<8x512xf32, #tpu.memory_space<vmem>>, vector<8x512xf32>
    tpu.vector_store %arg7[%c0_6, %c0_7], %7 {strides = array<i32>} : memref<8x512xf32, #tpu.memory_space<vmem>>, vector<8x512xf32>,
    %c0_i32_8 = arith.constant 0 : i32
    %9 = arith.cmpi eq, %arg1, %c0_i32_8 : i32
    %10 = arith.extui %9 : i1 to i32
    %c0_i32_9 = arith.constant 0 : i32
    %11 = arith.cmpi ne, %10, %c0_i32_9 : i32
    scf.if %11 {
      %c0_10 = arith.constant 0 : index
      %c0_11 = arith.constant 0 : index
      %12 = vector.load %arg7[%c0_10, %c0_11] : memref<8x512xf32, #tpu.memory_space<vmem>>, vector<8x512xf32>
      %c0_12 = arith.constant 0 : index
      %c0_13 = arith.constant 0 : index
      %13 = vector.load %arg4[%c0_12, %c0_13] : memref<1x512xf32, #tpu.memory_space<vmem>>, vector<1x512xf32>
      %14 = vector.broadcast %13 : vector<1x512xf32> to vector<8x512xf32>
      %15 = arith.addf %12, %14 : vector<8x512xf32>
      %c0_14 = arith.constant 0 : index
      %c0_15 = arith.constant 0 : index
      %16 = vector.load %arg5[%c0_14, %c0_15] : memref<1x512xf32, #tpu.memory_space<vmem>>, vector<1x512xf32>
      %17 = vector.broadcast %16 : vector<1x512xf32> to vector<8x512xf32>
      %18 = arith.mulf %15, %17 : vector<8x512xf32>
      %c0_16 = arith.constant 0 : index
      %c0_17 = arith.constant 0 : index
      %19 = vector.load %arg6[%c0_16, %c0_17] : memref<1x512xf32, #tpu.memory_space<vmem>>, vector<1x512xf32>
      %20 = vector.broadcast %19 : vector<1x512xf32> to vector<8x512xf32>
      %21 = arith.addf %18, %20 : vector<8x512xf32>
      %cst_18 = arith.constant 0.000000e+00 : f32
      %22 = vector.broadcast %cst_18 : f32 to vector<8x512xf32>
      %23 = arith.maximumf %21, %22 : vector<8x512xf32>
      %c0_19 = arith.constant 0 : index
      %c0_20 = arith.constant 0 : index
      %24 = vector.load %arg7[%c0_19, %c0_20] : memref<8x512xf32, #tpu.memory_space<vmem>>, vector<8x512xf32>
      tpu.vector_store %arg7[%c0_19, %c0_20], %23 {strides = array<i32>} : memref<8x512xf32, #tpu.memory_space<vmem>>, vector<8x512xf32>,
    } else {
    }
    return
  }
  func.func @transform_0(%arg0: i32, %arg1: i32) -> (i32, i32) {
    %c0_i32 = arith.constant 0 : i32
    %c0_i32_0 = arith.constant 0 : i32
    return %c0_i32, %arg1 : i32, i32
  }
  func.func @transform_1(%arg0: i32, %arg1: i32) -> (i32, i32) {
    %c0_i32 = arith.constant 0 : i32
    return %arg1, %arg0 : i32, i32
  }
  func.func @transform_2(%arg0: i32, %arg1: i32) -> (i32, i32) {
    %c0_i32 = arith.constant 0 : i32
    %c0_i32_0 = arith.constant 0 : i32
    return %c0_i32, %arg0 : i32, i32
  }
  func.func @transform_3(%arg0: i32, %arg1: i32) -> (i32, i32) {
    %c0_i32 = arith.constant 0 : i32
    %c0_i32_0 = arith.constant 0 : i32
    return %c0_i32, %arg0 : i32, i32
  }
  func.func @transform_4(%arg0: i32, %arg1: i32) -> (i32, i32) {
    %c0_i32 = arith.constant 0 : i32
    %c0_i32_0 = arith.constant 0 : i32
    return %c0_i32, %arg0 : i32, i32
  }
  func.func @transform_5(%arg0: i32, %arg1: i32) -> (i32, i32) {
    %c0_i32 = arith.constant 0 : i32
    %c0_i32_0 = arith.constant 0 : i32
    return %c0_i32, %arg0 : i32, i32
  }
}

module attributes {stable_mosaic.version = 11 : i64} {
  func.func @linear_kernel(%arg0: i32, %arg1: i32, %arg2: memref<8x512xbf16, #tpu.memory_space<vmem>>, %arg3: memref<512x512xbf16, #tpu.memory_space<vmem>>, %arg4: memref<1x512xf32, #tpu.memory_space<vmem>>, %arg5: memref<1x512xf32, #tpu.memory_space<vmem>>, %arg6: memref<1x512xf32, #tpu.memory_space<vmem>>, %arg7: memref<8x512xf32, #tpu.memory_space<vmem>>) attributes {dimension_semantics = [#tpu.dimension_semantics<parallel>, #tpu.dimension_semantics<arbitrary>], iteration_bounds = array<i64: 1, 1>, scalar_prefetch = 0 : i64, scratch_operands = 0 : i64, tpu.core_type = #tpu.core_type<tc>, window_params = [{transform_indices = @transform_0, window_bounds = array<i64: 8, 512>}, {transform_indices = @transform_1, window_bounds = array<i64: 512, 512>}, {transform_indices = @transform_2, window_bounds = array<i64: 1, 512>}, {transform_indices = @transform_3, window_bounds = array<i64: 1, 512>}, {transform_indices = @transform_4, window_bounds = array<i64: 1, 512>}, {transform_indices = @transform_5, window_bounds = array<i64: 8, 512>}]} {
    %c0_i32 = arith.constant 0 : i32
    %0 = arith.cmpi eq, %arg1, %c0_i32 : i32
    %1 = arith.extui %0 : i1 to i32
    %c0_i32_0 = arith.constant 0 : i32
    %2 = arith.cmpi ne, %1, %c0_i32_0 : i32
    scf.if %2 {
      %cst_10 = arith.constant 0.000000e+00 : f32
      %12 = vector.broadcast %cst_10 : f32 to vector<8x512xf32>
      %c0_11 = arith.constant 0 : index
      %c0_12 = arith.constant 0 : index
      %13 = vector.load %arg7[%c0_11, %c0_12] : memref<8x512xf32, #tpu.memory_space<vmem>>, vector<8x512xf32>
      tpu.vector_store %arg7[%c0_11, %c0_12], %12 {strides = array<i32>} : memref<8x512xf32, #tpu.memory_space<vmem>>, vector<8x512xf32>,
    } else {
    }
    %c0 = arith.constant 0 : index
    %c0_1 = arith.constant 0 : index
    %3 = vector.load %arg7[%c0, %c0_1] : memref<8x512xf32, #tpu.memory_space<vmem>>, vector<8x512xf32>
    %c0_2 = arith.constant 0 : index
    %c0_3 = arith.constant 0 : index
    %4 = vector.load %arg2[%c0_2, %c0_3] : memref<8x512xbf16, #tpu.memory_space<vmem>>, vector<8x512xbf16>
    %c0_4 = arith.constant 0 : index
    %c0_5 = arith.constant 0 : index
    %5 = vector.load %arg3[%c0_4, %c0_5] : memref<512x512xbf16, #tpu.memory_space<vmem>>, vector<512x512xbf16>
    %cst = arith.constant dense<0.000000e+00> : vector<8x512xf32>
    %6 = tpu.matmul %4, %5, %cst {dimension_numbers = #tpu.dot_dimension_numbers<[1], [0], [0], [1], [0, 0, 1, 1], [], []>} : vector<8x512xbf16>, vector<512x512xbf16>, vector<8x512xf32> -> vector<8x512xf32>
    %7 = arith.addf %3, %6 : vector<8x512xf32>
    %c0_6 = arith.constant 0 : index
    %c0_7 = arith.constant 0 : index
    %8 = vector.load %arg7[%c0_6, %c0_7] : memref<8x512xf32, #tpu.memory_space<vmem>>, vector<8x512xf32>
    tpu.vector_store %arg7[%c0_6, %c0_7], %7 {strides = array<i32>} : memref<8x512xf32, #tpu.memory_space<vmem>>, vector<8x512xf32>,
    %c0_i32_8 = arith.constant 0 : i32
    %9 = arith.cmpi eq, %arg1, %c0_i32_8 : i32
    %10 = arith.extui %9 : i1 to i32
    %c0_i32_9 = arith.constant 0 : i32
    %11 = arith.cmpi ne, %10, %c0_i32_9 : i32
    scf.if %11 {
      %c0_10 = arith.constant 0 : index
      %c0_11 = arith.constant 0 : index
      %12 = vector.load %arg7[%c0_10, %c0_11] : memref<8x512xf32, #tpu.memory_space<vmem>>, vector<8x512xf32>
      %c0_12 = arith.constant 0 : index
      %c0_13 = arith.constant 0 : index
      %13 = vector.load %arg4[%c0_12, %c0_13] : memref<1x512xf32, #tpu.memory_space<vmem>>, vector<1x512xf32>
      %14 = vector.broadcast %13 : vector<1x512xf32> to vector<8x512xf32>
      %15 = arith.addf %12, %14 : vector<8x512xf32>
      %c0_14 = arith.constant 0 : index
      %c0_15 = arith.constant 0 : index
      %16 = vector.load %arg5[%c0_14, %c0_15] : memref<1x512xf32, #tpu.memory_space<vmem>>, vector<1x512xf32>
      %17 = vector.broadcast %16 : vector<1x512xf32> to vector<8x512xf32>
      %18 = arith.mulf %15, %17 : vector<8x512xf32>
      %c0_16 = arith.constant 0 : index
      %c0_17 = arith.constant 0 : index
      %19 = vector.load %arg6[%c0_16, %c0_17] : memref<1x512xf32, #tpu.memory_space<vmem>>, vector<1x512xf32>
      %20 = vector.broadcast %19 : vector<1x512xf32> to vector<8x512xf32>
      %21 = arith.addf %18, %20 : vector<8x512xf32>
      %cst_18 = arith.constant 0.000000e+00 : f32
      %22 = vector.broadcast %cst_18 : f32 to vector<8x512xf32>
      %23 = arith.maximumf %21, %22 : vector<8x512xf32>
      %c0_19 = arith.constant 0 : index
      %c0_20 = arith.constant 0 : index
      %24 = vector.load %arg7[%c0_19, %c0_20] : memref<8x512xf32, #tpu.memory_space<vmem>>, vector<8x512xf32>
      tpu.vector_store %arg7[%c0_19, %c0_20], %23 {strides = array<i32>} : memref<8x512xf32, #tpu.memory_space<vmem>>, vector<8x512xf32>,
    } else {
    }
    return
  }
  func.func @transform_0(%arg0: i32, %arg1: i32) -> (i32, i32) {
    %c0_i32 = arith.constant 0 : i32
    %c0_i32_0 = arith.constant 0 : i32
    return %c0_i32, %arg1 : i32, i32
  }
  func.func @transform_1(%arg0: i32, %arg1: i32) -> (i32, i32) {
    %c0_i32 = arith.constant 0 : i32
    return %arg1, %arg0 : i32, i32
  }
  func.func @transform_2(%arg0: i32, %arg1: i32) -> (i32, i32) {
    %c0_i32 = arith.constant 0 : i32
    %c0_i32_0 = arith.constant 0 : i32
    return %c0_i32, %arg0 : i32, i32
  }
  func.func @transform_3(%arg0: i32, %arg1: i32) -> (i32, i32) {
    %c0_i32 = arith.constant 0 : i32
    %c0_i32_0 = arith.constant 0 : i32
    return %c0_i32, %arg0 : i32, i32
  }
  func.func @transform_4(%arg0: i32, %arg1: i32) -> (i32, i32) {
    %c0_i32 = arith.constant 0 : i32
    %c0_i32_0 = arith.constant 0 : i32
    return %c0_i32, %arg0 : i32, i32
  }
  func.func @transform_5(%arg0: i32, %arg1: i32) -> (i32, i32) {
    %c0_i32 = arith.constant 0 : i32
    %c0_i32_0 = arith.constant 0 : i32
    return %c0_i32, %arg0 : i32, i32
  }
}

module attributes {stable_mosaic.version = 11 : i64} {
  func.func @linear_kernel(%arg0: i32, %arg1: i32, %arg2: memref<8x512xbf16, #tpu.memory_space<vmem>>, %arg3: memref<512x128xbf16, #tpu.memory_space<vmem>>, %arg4: memref<1x128xf32, #tpu.memory_space<vmem>>, %arg5: memref<1x128xf32, #tpu.memory_space<vmem>>, %arg6: memref<1x128xf32, #tpu.memory_space<vmem>>, %arg7: memref<8x128xf32, #tpu.memory_space<vmem>>) attributes {dimension_semantics = [#tpu.dimension_semantics<parallel>, #tpu.dimension_semantics<arbitrary>], iteration_bounds = array<i64: 1, 1>, scalar_prefetch = 0 : i64, scratch_operands = 0 : i64, tpu.core_type = #tpu.core_type<tc>, window_params = [{transform_indices = @transform_0, window_bounds = array<i64: 8, 512>}, {transform_indices = @transform_1, window_bounds = array<i64: 512, 128>}, {transform_indices = @transform_2, window_bounds = array<i64: 1, 128>}, {transform_indices = @transform_3, window_bounds = array<i64: 1, 128>}, {transform_indices = @transform_4, window_bounds = array<i64: 1, 128>}, {transform_indices = @transform_5, window_bounds = array<i64: 8, 128>}]} {
    %c0_i32 = arith.constant 0 : i32
    %0 = arith.cmpi eq, %arg1, %c0_i32 : i32
    %1 = arith.extui %0 : i1 to i32
    %c0_i32_0 = arith.constant 0 : i32
    %2 = arith.cmpi ne, %1, %c0_i32_0 : i32
    scf.if %2 {
      %cst_10 = arith.constant 0.000000e+00 : f32
      %12 = vector.broadcast %cst_10 : f32 to vector<8x128xf32>
      %c0_11 = arith.constant 0 : index
      %c0_12 = arith.constant 0 : index
      %13 = vector.load %arg7[%c0_11, %c0_12] : memref<8x128xf32, #tpu.memory_space<vmem>>, vector<8x128xf32>
      tpu.vector_store %arg7[%c0_11, %c0_12], %12 {strides = array<i32>} : memref<8x128xf32, #tpu.memory_space<vmem>>, vector<8x128xf32>,
    } else {
    }
    %c0 = arith.constant 0 : index
    %c0_1 = arith.constant 0 : index
    %3 = vector.load %arg7[%c0, %c0_1] : memref<8x128xf32, #tpu.memory_space<vmem>>, vector<8x128xf32>
    %c0_2 = arith.constant 0 : index
    %c0_3 = arith.constant 0 : index
    %4 = vector.load %arg2[%c0_2, %c0_3] : memref<8x512xbf16, #tpu.memory_space<vmem>>, vector<8x512xbf16>
    %c0_4 = arith.constant 0 : index
    %c0_5 = arith.constant 0 : index
    %5 = vector.load %arg3[%c0_4, %c0_5] : memref<512x128xbf16, #tpu.memory_space<vmem>>, vector<512x128xbf16>
    %cst = arith.constant dense<0.000000e+00> : vector<8x128xf32>
    %6 = tpu.matmul %4, %5, %cst {dimension_numbers = #tpu.dot_dimension_numbers<[1], [0], [0], [1], [0, 0, 1, 1], [], []>} : vector<8x512xbf16>, vector<512x128xbf16>, vector<8x128xf32> -> vector<8x128xf32>
    %7 = arith.addf %3, %6 : vector<8x128xf32>
    %c0_6 = arith.constant 0 : index
    %c0_7 = arith.constant 0 : index
    %8 = vector.load %arg7[%c0_6, %c0_7] : memref<8x128xf32, #tpu.memory_space<vmem>>, vector<8x128xf32>
    tpu.vector_store %arg7[%c0_6, %c0_7], %7 {strides = array<i32>} : memref<8x128xf32, #tpu.memory_space<vmem>>, vector<8x128xf32>,
    %c0_i32_8 = arith.constant 0 : i32
    %9 = arith.cmpi eq, %arg1, %c0_i32_8 : i32
    %10 = arith.extui %9 : i1 to i32
    %c0_i32_9 = arith.constant 0 : i32
    %11 = arith.cmpi ne, %10, %c0_i32_9 : i32
    scf.if %11 {
      %c0_10 = arith.constant 0 : index
      %c0_11 = arith.constant 0 : index
      %12 = vector.load %arg7[%c0_10, %c0_11] : memref<8x128xf32, #tpu.memory_space<vmem>>, vector<8x128xf32>
      %c0_12 = arith.constant 0 : index
      %c0_13 = arith.constant 0 : index
      %13 = vector.load %arg4[%c0_12, %c0_13] : memref<1x128xf32, #tpu.memory_space<vmem>>, vector<1x128xf32>
      %14 = vector.broadcast %13 : vector<1x128xf32> to vector<8x128xf32>
      %15 = arith.addf %12, %14 : vector<8x128xf32>
      %c0_14 = arith.constant 0 : index
      %c0_15 = arith.constant 0 : index
      %16 = vector.load %arg7[%c0_14, %c0_15] : memref<8x128xf32, #tpu.memory_space<vmem>>, vector<8x128xf32>
      tpu.vector_store %arg7[%c0_14, %c0_15], %15 {strides = array<i32>} : memref<8x128xf32, #tpu.memory_space<vmem>>, vector<8x128xf32>,
    } else {
    }
    return
  }
  func.func @transform_0(%arg0: i32, %arg1: i32) -> (i32, i32) {
    %c0_i32 = arith.constant 0 : i32
    %c0_i32_0 = arith.constant 0 : i32
    return %c0_i32, %arg1 : i32, i32
  }
  func.func @transform_1(%arg0: i32, %arg1: i32) -> (i32, i32) {
    %c0_i32 = arith.constant 0 : i32
    return %arg1, %arg0 : i32, i32
  }
  func.func @transform_2(%arg0: i32, %arg1: i32) -> (i32, i32) {
    %c0_i32 = arith.constant 0 : i32
    %c0_i32_0 = arith.constant 0 : i32
    return %c0_i32, %arg0 : i32, i32
  }
  func.func @transform_3(%arg0: i32, %arg1: i32) -> (i32, i32) {
    %c0_i32 = arith.constant 0 : i32
    %c0_i32_0 = arith.constant 0 : i32
    return %c0_i32, %arg0 : i32, i32
  }
  func.func @transform_4(%arg0: i32, %arg1: i32) -> (i32, i32) {
    %c0_i32 = arith.constant 0 : i32
    %c0_i32_0 = arith.constant 0 : i32
    return %c0_i32, %arg0 : i32, i32
  }
  func.func @transform_5(%arg0: i32, %arg1: i32) -> (i32, i32) {
    %c0_i32 = arith.constant 0 : i32
    %c0_i32_0 = arith.constant 0 : i32
    return %c0_i32, %arg0 : i32, i32
  }
}

</mosaic_0001>

<llo_original>
// kernel: model_forward.3
$region0: #{model_forward.3}
  #allocation0 [shape = 'u32[]', space=smem, size = 0x4, offset = 0x4, fixed_abs, tag = 'smem constant byte address 0x4 - core index']
  #allocation1 [shape = 'u32[144,128]{1,0:T(1,128)}', space=vmem, size = 0x12000, scoped, tag = 'internal scratch']
  %s0 = inlined_call_operand.vmem [shape: bf16[8,256], index: 0, kind: input, shape index: {}]
  %s1 = inlined_call_operand.vmem [shape: bf16[256,512], index: 1, kind: input, shape index: {}]
  %s2 = inlined_call_operand.vmem [shape: f32[1,512], index: 2, kind: input, shape index: {}]
  %s3 = inlined_call_operand.vmem [shape: f32[1,512], index: 3, kind: input, shape index: {}]
  %s4 = inlined_call_operand.hbm [shape: f32[1,512], index: 4, kind: input, shape index: {}]
  %s5 = inlined_call_operand.vmem [shape: f32[8,512], index: 5, kind: output, shape index: {}]
  %s6 = sld [smem:[#allocation0]]
  $region42: #{model_forward.3} parent=0
    _
  %s8 = ssub.s32 1, %s6
  %s9 = scalar_select 0, %s8, %s6
  $region1: #{model_forward.3} parent=0
    #allocation2 [shape = 'u8[2048]{0}', space=vmem, size = 0x800, scoped, tag = 'input window, operand 4, single buffered']
    #allocation3 [shape = 's32[1]{0}', space=sflag, size = 0x4, scoped, tag = 'scoped memory for model_forward.3']
    %10 = vsyncpa [#allocation3], 0
    // Predicated region
    $region2: #{model_forward.3} parent=1 // pred_check
      _
    $region3: #{model_forward.3} parent=1 // pred_check_branch
      %12 = sbr.rel (0) target = $region5
    $region4: #{model_forward.3} parent=1 // pred_region
      _
    $region5: #{model_forward.3} parent=1 // pred_fallthru
      _
    // Predicated region
    $region6: #{model_forward.3} parent=1 // pred_check
      _
    $region7: #{model_forward.3} parent=1 // pred_check_branch
      %14 = sbr.rel (0) target = $region9
    $region8: #{model_forward.3} parent=1 // pred_region
      _
    $region9: #{model_forward.3} parent=1 // pred_fallthru
      _
    // Predicated region
    $region10: #{model_forward.3} parent=1 // pred_check
      _
    $region11: #{model_forward.3} parent=1 // pred_check_branch
      %16 = sbr.rel (0) target = $region13
    $region12: #{model_forward.3} parent=1 // pred_region
      _
    $region13: #{model_forward.3} parent=1 // pred_fallthru
      _
    // Predicated region
    $region14: #{model_forward.3} parent=1 // pred_check
      _
    $region15: #{model_forward.3} parent=1 // pred_check_branch
      %18 = sbr.rel (0) target = $region17
    $region16: #{model_forward.3} parent=1 // pred_region
      _
    $region17: #{model_forward.3} parent=1 // pred_fallthru
      _
    // Predicated region
    $region18: #{model_forward.3} parent=1 // pred_check
      _
    $region19: #{model_forward.3} parent=1 // pred_check_branch
      %20 = sbr.rel (0) target = $region21
    $region20: #{model_forward.3} parent=1 // pred_region
      %s22 = ssub.s32 64, 64
      %23 = vsyncadd [#allocation3], %s22
      %s25 = sshll.u32 [#allocation2], 4
      %s26 = int_to_ptr.vmem [resolvable:$true] %s25
      %28 = dma.hbm_to_vmem [thread:$0]  %s4, 64, %s26, [#allocation3]
    $region21: #{model_forward.3} parent=1 // pred_fallthru
      _
    // Predicated region
    $region22: #{model_forward.3} parent=1 // pred_check
      _
    $region23: #{model_forward.3} parent=1 // pred_check_branch
      %30 = sbr.rel (0) target = $region25
    $region24: #{model_forward.3} parent=1 // pred_region
      %31 = dma.done [#allocation3], 64
    $region25: #{model_forward.3} parent=1 // pred_fallthru
      _
    %p32 = scmp.eq.s32.totalorder 0, 0
    // Predicated region
    $region26: #{model_forward.3} parent=1 // pred_check
      %p33 = pneg %p32
    $region27: #{model_forward.3} parent=1 // pred_check_branch
      %35 = sbr.rel (%p33) target = $region29
    $region28: #{model_forward.3} parent=1 // pred_region
      %36 = vst [vmem:[%s5] sm:$0xff] 0.0
      %37 = vst [vmem:[%s5 + $0x8] sm:$0xff] 0.0
      %38 = vst [vmem:[%s5 + $0x10] sm:$0xff] 0.0
      %39 = vst [vmem:[%s5 + $0x18] sm:$0xff] 0.0
    $region29: #{model_forward.3} parent=1 // pred_fallthru
      _
    %v40 = vld [vmem:[%s5] sm:$0xff]
    %v41 = vld [vmem:[%s5 + $0x8] sm:$0xff]
    %v42 = vld [vmem:[%s5 + $0x10] sm:$0xff]
    %v43 = vld [vmem:[%s5 + $0x18] sm:$0xff]
    %v44 = vld [vmem:[%s0] sm:$0xff]
    %v45 = vld [vmem:[%s1] sm:$0xff]
    %v46 = vld [vmem:[%s1 + $0x8] sm:$0xff]
    %v47 = vld [vmem:[%s1 + $0x10] sm:$0xff]
    %v48 = vld [vmem:[%s1 + $0x18] sm:$0xff]
    %v49 = vld [vmem:[%s1 + $0x20] sm:$0xff]
    %v50 = vld [vmem:[%s1 + $0x28] sm:$0xff]
    %v51 = vld [vmem:[%s1 + $0x30] sm:$0xff]
    %v52 = vld [vmem:[%s1 + $0x38] sm:$0xff]
    %v53 = vld [vmem:[%s1 + $0x40] sm:$0xff]
    %v54 = vld [vmem:[%s1 + $0x48] sm:$0xff]
    %v55 = vld [vmem:[%s1 + $0x50] sm:$0xff]
    %v56 = vld [vmem:[%s1 + $0x58] sm:$0xff]
    %v57 = vld [vmem:[%s1 + $0x60] sm:$0xff]
    %v58 = vld [vmem:[%s1 + $0x68] sm:$0xff]
    %v59 = vld [vmem:[%s1 + $0x70] sm:$0xff]
    %v60 = vld [vmem:[%s1 + $0x78] sm:$0xff]
    %v61 = vld [vmem:[%s1 + $0x80] sm:$0xff]
    %v62 = vld [vmem:[%s1 + $0x88] sm:$0xff]
    %v63 = vld [vmem:[%s1 + $0x90] sm:$0xff]
    %v64 = vld [vmem:[%s1 + $0x98] sm:$0xff]
    %v65 = vld [vmem:[%s1 + $0xa0] sm:$0xff]
    %v66 = vld [vmem:[%s1 + $0xa8] sm:$0xff]
    %v67 = vld [vmem:[%s1 + $0xb0] sm:$0xff]
    %v68 = vld [vmem:[%s1 + $0xb8] sm:$0xff]
    %v69 = vld [vmem:[%s1 + $0xc0] sm:$0xff]
    %v70 = vld [vmem:[%s1 + $0xc8] sm:$0xff]
    %v71 = vld [vmem:[%s1 + $0xd0] sm:$0xff]
    %v72 = vld [vmem:[%s1 + $0xd8] sm:$0xff]
    %v73 = vld [vmem:[%s1 + $0xe0] sm:$0xff]
    %v74 = vld [vmem:[%s1 + $0xe8] sm:$0xff]
    %v75 = vld [vmem:[%s1 + $0xf0] sm:$0xff]
    %v76 = vld [vmem:[%s1 + $0xf8] sm:$0xff]
    %v77 = vld [vmem:[%s1 + $0x100] sm:$0xff]
    %v78 = vld [vmem:[%s1 + $0x108] sm:$0xff]
    %v79 = vld [vmem:[%s1 + $0x110] sm:$0xff]
    %v80 = vld [vmem:[%s1 + $0x118] sm:$0xff]
    %v81 = vld [vmem:[%s1 + $0x120] sm:$0xff]
    %v82 = vld [vmem:[%s1 + $0x128] sm:$0xff]
    %v83 = vld [vmem:[%s1 + $0x130] sm:$0xff]
    %v84 = vld [vmem:[%s1 + $0x138] sm:$0xff]
    %v85 = vld [vmem:[%s1 + $0x140] sm:$0xff]
    %v86 = vld [vmem:[%s1 + $0x148] sm:$0xff]
    %v87 = vld [vmem:[%s1 + $0x150] sm:$0xff]
    %v88 = vld [vmem:[%s1 + $0x158] sm:$0xff]
    %v89 = vld [vmem:[%s1 + $0x160] sm:$0xff]
    %v90 = vld [vmem:[%s1 + $0x168] sm:$0xff]
    %v91 = vld [vmem:[%s1 + $0x170] sm:$0xff]
    %v92 = vld [vmem:[%s1 + $0x178] sm:$0xff]
    %v93 = vld [vmem:[%s1 + $0x180] sm:$0xff]
    %v94 = vld [vmem:[%s1 + $0x188] sm:$0xff]
    %v95 = vld [vmem:[%s1 + $0x190] sm:$0xff]
    %v96 = vld [vmem:[%s1 + $0x198] sm:$0xff]
    %v97 = vld [vmem:[%s1 + $0x1a0] sm:$0xff]
    %v98 = vld [vmem:[%s1 + $0x1a8] sm:$0xff]
    %v99 = vld [vmem:[%s1 + $0x1b0] sm:$0xff]
    %v100 = vld [vmem:[%s1 + $0x1b8] sm:$0xff]
    %v101 = vld [vmem:[%s1 + $0x1c0] sm:$0xff]
    %v102 = vld [vmem:[%s1 + $0x1c8] sm:$0xff]
    %v103 = vld [vmem:[%s1 + $0x1d0] sm:$0xff]
    %v104 = vld [vmem:[%s1 + $0x1d8] sm:$0xff]
    %v105 = vld [vmem:[%s1 + $0x1e0] sm:$0xff]
    %v106 = vld [vmem:[%s1 + $0x1e8] sm:$0xff]
    %v107 = vld [vmem:[%s1 + $0x1f0] sm:$0xff]
    %v108 = vld [vmem:[%s1 + $0x1f8] sm:$0xff]
    %v110 = vunpack.c.l.b16 %v44
    %v111 = vunpack.c.h.b16 %v44
    %v112 = vpack.c.b16 %v110, %v110
    %v113 = vpack.c.b16 %v111, %v111
    %v180 = vunpack.c.l.b16 %v45
    %v181 = vunpack.c.h.b16 %v45
    %v182 = vunpack.c.l.b16 %v46
    %v183 = vunpack.c.h.b16 %v46
    %v184 = vunpack.c.l.b16 %v47
    %v185 = vunpack.c.h.b16 %v47
    %v186 = vunpack.c.l.b16 %v48
    %v187 = vunpack.c.h.b16 %v48
    %v188 = vunpack.c.l.b16 %v49
    %v189 = vunpack.c.h.b16 %v49
    %v190 = vunpack.c.l.b16 %v50
    %v191 = vunpack.c.h.b16 %v50
    %v192 = vunpack.c.l.b16 %v51
    %v193 = vunpack.c.h.b16 %v51
    %v194 = vunpack.c.l.b16 %v52
    %v195 = vunpack.c.h.b16 %v52
    %v196 = vunpack.c.l.b16 %v53
    %v197 = vunpack.c.h.b16 %v53
    %v198 = vunpack.c.l.b16 %v54
    %v199 = vunpack.c.h.b16 %v54
    %v200 = vunpack.c.l.b16 %v55
    %v201 = vunpack.c.h.b16 %v55
    %v202 = vunpack.c.l.b16 %v56
    %v203 = vunpack.c.h.b16 %v56
    %v204 = vunpack.c.l.b16 %v57
    %v205 = vunpack.c.h.b16 %v57
    %v206 = vunpack.c.l.b16 %v58
    %v207 = vunpack.c.h.b16 %v58
    %v208 = vunpack.c.l.b16 %v59
    %v209 = vunpack.c.h.b16 %v59
    %v210 = vunpack.c.l.b16 %v60
    %v211 = vunpack.c.h.b16 %v60
    %v212 = vunpack.c.l.b16 %v61
    %v213 = vunpack.c.h.b16 %v61
    %v214 = vunpack.c.l.b16 %v62
    %v215 = vunpack.c.h.b16 %v62
    %v216 = vunpack.c.l.b16 %v63
    %v217 = vunpack.c.h.b16 %v63
    %v218 = vunpack.c.l.b16 %v64
    %v219 = vunpack.c.h.b16 %v64
    %v220 = vunpack.c.l.b16 %v65
    %v221 = vunpack.c.h.b16 %v65
    %v222 = vunpack.c.l.b16 %v66
    %v223 = vunpack.c.h.b16 %v66
    %v224 = vunpack.c.l.b16 %v67
    %v225 = vunpack.c.h.b16 %v67
    %v226 = vunpack.c.l.b16 %v68
    %v227 = vunpack.c.h.b16 %v68
    %v228 = vunpack.c.l.b16 %v69
    %v229 = vunpack.c.h.b16 %v69
    %v230 = vunpack.c.l.b16 %v70
    %v231 = vunpack.c.h.b16 %v70
    %v232 = vunpack.c.l.b16 %v71
    %v233 = vunpack.c.h.b16 %v71
    %v234 = vunpack.c.l.b16 %v72
    %v235 = vunpack.c.h.b16 %v72
    %v236 = vunpack.c.l.b16 %v73
    %v237 = vunpack.c.h.b16 %v73
    %v238 = vunpack.c.l.b16 %v74
    %v239 = vunpack.c.h.b16 %v74
    %v240 = vunpack.c.l.b16 %v75
    %v241 = vunpack.c.h.b16 %v75
    %v242 = vunpack.c.l.b16 %v76
    %v243 = vunpack.c.h.b16 %v76
    %v244 = vunpack.c.l.b16 %v77
    %v245 = vunpack.c.h.b16 %v77
    %v246 = vunpack.c.l.b16 %v78
    %v247 = vunpack.c.h.b16 %v78
    %v248 = vunpack.c.l.b16 %v79
    %v249 = vunpack.c.h.b16 %v79
    %v250 = vunpack.c.l.b16 %v80
    %v251 = vunpack.c.h.b16 %v80
    %v252 = vunpack.c.l.b16 %v81
    %v253 = vunpack.c.h.b16 %v81
    %v254 = vunpack.c.l.b16 %v82
    %v255 = vunpack.c.h.b16 %v82
    %v256 = vunpack.c.l.b16 %v83
    %v257 = vunpack.c.h.b16 %v83
    %v258 = vunpack.c.l.b16 %v84
    %v259 = vunpack.c.h.b16 %v84
    %v260 = vunpack.c.l.b16 %v85
    %v261 = vunpack.c.h.b16 %v85
    %v262 = vunpack.c.l.b16 %v86
    %v263 = vunpack.c.h.b16 %v86
    %v264 = vunpack.c.l.b16 %v87
    %v265 = vunpack.c.h.b16 %v87
    %v266 = vunpack.c.l.b16 %v88
    %v267 = vunpack.c.h.b16 %v88
    %v268 = vunpack.c.l.b16 %v89
    %v269 = vunpack.c.h.b16 %v89
    %v270 = vunpack.c.l.b16 %v90
    %v271 = vunpack.c.h.b16 %v90
    %v272 = vunpack.c.l.b16 %v91
    %v273 = vunpack.c.h.b16 %v91
    %v274 = vunpack.c.l.b16 %v92
    %v275 = vunpack.c.h.b16 %v92
    %v276 = vunpack.c.l.b16 %v93
    %v277 = vunpack.c.h.b16 %v93
    %v278 = vunpack.c.l.b16 %v94
    %v279 = vunpack.c.h.b16 %v94
    %v280 = vunpack.c.l.b16 %v95
    %v281 = vunpack.c.h.b16 %v95
    %v282 = vunpack.c.l.b16 %v96
    %v283 = vunpack.c.h.b16 %v96
    %v284 = vunpack.c.l.b16 %v97
    %v285 = vunpack.c.h.b16 %v97
    %v286 = vunpack.c.l.b16 %v98
    %v287 = vunpack.c.h.b16 %v98
    %v288 = vunpack.c.l.b16 %v99
    %v289 = vunpack.c.h.b16 %v99
    %v290 = vunpack.c.l.b16 %v100
    %v291 = vunpack.c.h.b16 %v100
    %v292 = vunpack.c.l.b16 %v101
    %v293 = vunpack.c.h.b16 %v101
    %v294 = vunpack.c.l.b16 %v102
    %v295 = vunpack.c.h.b16 %v102
    %v296 = vunpack.c.l.b16 %v103
    %v297 = vunpack.c.h.b16 %v103
    %v298 = vunpack.c.l.b16 %v104
    %v299 = vunpack.c.h.b16 %v104
    %v300 = vunpack.c.l.b16 %v105
    %v301 = vunpack.c.h.b16 %v105
    %v302 = vunpack.c.l.b16 %v106
    %v303 = vunpack.c.h.b16 %v106
    %v304 = vunpack.c.l.b16 %v107
    %v305 = vunpack.c.h.b16 %v107
    %v306 = vunpack.c.l.b16 %v108
    %v307 = vunpack.c.h.b16 %v108
    %v308 = vpack.c.b16 %v184, %v180
    %v309 = vpack.c.b16 %v185, %v181
    %v310 = vpack.c.b16 %v186, %v182
    %v311 = vpack.c.b16 %v187, %v183
    %v312 = vpack.c.b16 %v192, %v188
    %v313 = vpack.c.b16 %v193, %v189
    %v314 = vpack.c.b16 %v194, %v190
    %v315 = vpack.c.b16 %v195, %v191
    %v316 = vpack.c.b16 %v200, %v196
    %v317 = vpack.c.b16 %v201, %v197
    %v318 = vpack.c.b16 %v202, %v198
    %v319 = vpack.c.b16 %v203, %v199
    %v320 = vpack.c.b16 %v208, %v204
    %v321 = vpack.c.b16 %v209, %v205
    %v322 = vpack.c.b16 %v210, %v206
    %v323 = vpack.c.b16 %v211, %v207
    %v324 = vpack.c.b16 %v216, %v212
    %v325 = vpack.c.b16 %v217, %v213
    %v326 = vpack.c.b16 %v218, %v214
    %v327 = vpack.c.b16 %v219, %v215
    %v328 = vpack.c.b16 %v224, %v220
    %v329 = vpack.c.b16 %v225, %v221
    %v330 = vpack.c.b16 %v226, %v222
    %v331 = vpack.c.b16 %v227, %v223
    %v332 = vpack.c.b16 %v232, %v228
    %v333 = vpack.c.b16 %v233, %v229
    %v334 = vpack.c.b16 %v234, %v230
    %v335 = vpack.c.b16 %v235, %v231
    %v336 = vpack.c.b16 %v240, %v236
    %v337 = vpack.c.b16 %v241, %v237
    %v338 = vpack.c.b16 %v242, %v238
    %v339 = vpack.c.b16 %v243, %v239
    %v340 = vpack.c.b16 %v248, %v244
    %v341 = vpack.c.b16 %v249, %v245
    %v342 = vpack.c.b16 %v250, %v246
    %v343 = vpack.c.b16 %v251, %v247
    %v344 = vpack.c.b16 %v256, %v252
    %v345 = vpack.c.b16 %v257, %v253
    %v346 = vpack.c.b16 %v258, %v254
    %v347 = vpack.c.b16 %v259, %v255
    %v348 = vpack.c.b16 %v264, %v260
    %v349 = vpack.c.b16 %v265, %v261
    %v350 = vpack.c.b16 %v266, %v262
    %v351 = vpack.c.b16 %v267, %v263
    %v352 = vpack.c.b16 %v272, %v268
    %v353 = vpack.c.b16 %v273, %v269
    %v354 = vpack.c.b16 %v274, %v270
    %v355 = vpack.c.b16 %v275, %v271
    %v356 = vpack.c.b16 %v280, %v276
    %v357 = vpack.c.b16 %v281, %v277
    %v358 = vpack.c.b16 %v282, %v278
    %v359 = vpack.c.b16 %v283, %v279
    %v360 = vpack.c.b16 %v288, %v284
    %v361 = vpack.c.b16 %v289, %v285
    %v362 = vpack.c.b16 %v290, %v286
    %v363 = vpack.c.b16 %v291, %v287
    %v364 = vpack.c.b16 %v296, %v292
    %v365 = vpack.c.b16 %v297, %v293
    %v366 = vpack.c.b16 %v298, %v294
    %v367 = vpack.c.b16 %v299, %v295
    %v368 = vpack.c.b16 %v304, %v300
    %v369 = vpack.c.b16 %v305, %v301
    %v370 = vpack.c.b16 %v306, %v302
    %v371 = vpack.c.b16 %v307, %v303
    %436 = vmatprep.subr.bf16.mxu0 %v309
    %437 = vmatpush1.bf16.msra.mxu0 %v308
    %438 = vmatprep.subr.bf16.mxu0 %v313
    %439 = vmatpush1.bf16.msra.mxu0 %v312
    %440 = vmatprep.subr.bf16.mxu0 %v317
    %441 = vmatpush1.bf16.msra.mxu0 %v316
    %442 = vmatprep.subr.bf16.mxu0 %v321
    %443 = vmatpush1.bf16.msra.mxu0 %v320
    %444 = vmatprep.subr.bf16.mxu0 %v325
    %445 = vmatpush1.bf16.msra.mxu0 %v324
    %446 = vmatprep.subr.bf16.mxu0 %v329
    %447 = vmatpush1.bf16.msra.mxu0 %v328
    %448 = vmatprep.subr.bf16.mxu0 %v333
    %449 = vmatpush1.bf16.msra.mxu0 %v332
    %450 = vmatprep.subr.bf16.mxu0 %v337
    %451 = vmatpush1.bf16.msra.mxu0 %v336
    %452 = vmatprep.subr.bf16.mxu0 %v341
    %453 = vmatpush1.bf16.msra.mxu0 %v340
    %454 = vmatprep.subr.bf16.mxu0 %v345
    %455 = vmatpush1.bf16.msra.mxu0 %v344
    %456 = vmatprep.subr.bf16.mxu0 %v349
    %457 = vmatpush1.bf16.msra.mxu0 %v348
    %458 = vmatprep.subr.bf16.mxu0 %v353
    %459 = vmatpush1.bf16.msra.mxu0 %v352
    %460 = vmatprep.subr.bf16.mxu0 %v357
    %461 = vmatpush1.bf16.msra.mxu0 %v356
    %462 = vmatprep.subr.bf16.mxu0 %v361
    %463 = vmatpush1.bf16.msra.mxu0 %v360
    %464 = vmatprep.subr.bf16.mxu0 %v365
    %465 = vmatpush1.bf16.msra.mxu0 %v364
    %466 = vmatprep.subr.bf16.mxu0 %v369
    %467 = vmatpush1.bf16.msra.mxu0 %v368
    %468 = vmatprep.mubr.bf16.mxu0 %v113
    %469 = vmatmul.mubr.bf16.gmra.mrb[0].mxu0 %v112
    %v470 = vpop.f32.mrb[0].mxu0
    %v471 = vadd.f32 0.0, %v470
    %v472 = vpop.f32.mrb[0].mxu0
    %v473 = vadd.f32 0.0, %v472
    %v474 = vpop.f32.mrb[0].mxu0
    %v475 = vpop.f32.mrb[0].mxu0
    %476 = vdwg.mxu0
    %477 = vmatprep.subr.bf16.mxu0 %v311
    %478 = vmatpush1.bf16.msra.mxu0 %v310
    %479 = vmatprep.subr.bf16.mxu0 %v315
    %480 = vmatpush1.bf16.msra.mxu0 %v314
    %481 = vmatprep.subr.bf16.mxu0 %v319
    %482 = vmatpush1.bf16.msra.mxu0 %v318
    %483 = vmatprep.subr.bf16.mxu0 %v323
    %484 = vmatpush1.bf16.msra.mxu0 %v322
    %485 = vmatprep.subr.bf16.mxu0 %v327
    %486 = vmatpush1.bf16.msra.mxu0 %v326
    %487 = vmatprep.subr.bf16.mxu0 %v331
    %488 = vmatpush1.bf16.msra.mxu0 %v330
    %489 = vmatprep.subr.bf16.mxu0 %v335
    %490 = vmatpush1.bf16.msra.mxu0 %v334
    %491 = vmatprep.subr.bf16.mxu0 %v339
    %492 = vmatpush1.bf16.msra.mxu0 %v338
    %493 = vmatprep.subr.bf16.mxu0 %v343
    %494 = vmatpush1.bf16.msra.mxu0 %v342
    %495 = vmatprep.subr.bf16.mxu0 %v347
    %496 = vmatpush1.bf16.msra.mxu0 %v346
    %497 = vmatprep.subr.bf16.mxu0 %v351
    %498 = vmatpush1.bf16.msra.mxu0 %v350
    %499 = vmatprep.subr.bf16.mxu0 %v355
    %500 = vmatpush1.bf16.msra.mxu0 %v354
    %501 = vmatprep.subr.bf16.mxu0 %v359
    %502 = vmatpush1.bf16.msra.mxu0 %v358
    %503 = vmatprep.subr.bf16.mxu0 %v363
    %504 = vmatpush1.bf16.msra.mxu0 %v362
    %505 = vmatprep.subr.bf16.mxu0 %v367
    %506 = vmatpush1.bf16.msra.mxu0 %v366
    %507 = vmatprep.subr.bf16.mxu0 %v371
    %508 = vmatpush1.bf16.msra.mxu0 %v370
    %509 = vmatprep.mubr.bf16.mxu0 %v113
    %510 = vmatmul.mubr.bf16.gmra.mrb[0].mxu0 %v112
    %v511 = vpop.f32.mrb[0].mxu0
    %v512 = vadd.f32 0.0, %v511
    %v513 = vpop.f32.mrb[0].mxu0
    %v514 = vadd.f32 0.0, %v513
    %v515 = vpop.f32.mrb[0].mxu0
    %v516 = vpop.f32.mrb[0].mxu0
    %517 = vdwg.mxu0
    %v518 = vadd.f32 %v40, %v471
    %v519 = vadd.f32 %v41, %v473
    %v520 = vadd.f32 %v42, %v512
    %v521 = vadd.f32 %v43, %v514
    %522 = vst [vmem:[%s5] sm:$0xff] %v518
    %523 = vst [vmem:[%s5 + $0x8] sm:$0xff] %v519
    %524 = vst [vmem:[%s5 + $0x10] sm:$0xff] %v520
    %525 = vst [vmem:[%s5 + $0x18] sm:$0xff] %v521
    // Predicated region
    $region30: #{model_forward.3} parent=1 // pred_check
      %p526 = pneg %p32
    $region31: #{model_forward.3} parent=1 // pred_check_branch
      %528 = sbr.rel (%p526) target = $region33
    $region32: #{model_forward.3} parent=1 // pred_region
      %v529 = vld [vmem:[%s5] sm:$0xff]
      %v530 = vld [vmem:[%s5 + $0x8] sm:$0xff]
      %v531 = vld [vmem:[%s5 + $0x10] sm:$0xff]
      %v532 = vld [vmem:[%s5 + $0x18] sm:$0xff]
      %v533 = vld [vmem:[%s2] sm:$0xf]
      %v535 = vlaneseq
      %v536 = vshrl.u32 %v535, 7
      %v537 = vsub.s32 0, %v536
      %v538 = vrot.slane %v533, %v537
      %v539 = vlaneseq
      %v540 = vshrl.u32 %v539, 7
      %v541 = vsub.s32 1, %v540
      %v542 = vrot.slane %v533, %v541
      %v543 = vlaneseq
      %v544 = vshrl.u32 %v543, 7
      %v545 = vsub.s32 2, %v544
      %v546 = vrot.slane %v533, %v545
      %v547 = vlaneseq
      %v548 = vshrl.u32 %v547, 7
      %v549 = vsub.s32 3, %v548
      %v550 = vrot.slane %v533, %v549
      %v555 = vadd.f32 %v529, %v538
      %v556 = vadd.f32 %v530, %v542
      %v557 = vadd.f32 %v531, %v546
      %v558 = vadd.f32 %v532, %v550
      %v559 = vld [vmem:[%s3] sm:$0xf]
      %v561 = vlaneseq
      %v562 = vshrl.u32 %v561, 7
      %v563 = vsub.s32 0, %v562
      %v564 = vrot.slane %v559, %v563
      %v565 = vlaneseq
      %v566 = vshrl.u32 %v565, 7
      %v567 = vsub.s32 1, %v566
      %v568 = vrot.slane %v559, %v567
      %v569 = vlaneseq
      %v570 = vshrl.u32 %v569, 7
      %v571 = vsub.s32 2, %v570
      %v572 = vrot.slane %v559, %v571
      %v573 = vlaneseq
      %v574 = vshrl.u32 %v573, 7
      %v575 = vsub.s32 3, %v574
      %v576 = vrot.slane %v559, %v575
      %v581 = vmul.f32 %v555, %v564
      %v582 = vmul.f32 %v556, %v568
      %v583 = vmul.f32 %v557, %v572
      %v584 = vmul.f32 %v558, %v576
      %v585 = vld [vmem:[#allocation2] sm:$0xf]
      %v587 = vlaneseq
      %v588 = vshrl.u32 %v587, 7
      %v589 = vsub.s32 0, %v588
      %v590 = vrot.slane %v585, %v589
      %v591 = vlaneseq
      %v592 = vshrl.u32 %v591, 7
      %v593 = vsub.s32 1, %v592
      %v594 = vrot.slane %v585, %v593
      %v595 = vlaneseq
      %v596 = vshrl.u32 %v595, 7
      %v597 = vsub.s32 2, %v596
      %v598 = vrot.slane %v585, %v597
      %v599 = vlaneseq
      %v600 = vshrl.u32 %v599, 7
      %v601 = vsub.s32 3, %v600
      %v602 = vrot.slane %v585, %v601
      %v607 = vadd.f32 %v581, %v590
      %v608 = vadd.f32 %v582, %v594
      %v609 = vadd.f32 %v583, %v598
      %v610 = vadd.f32 %v584, %v602
      %v611 = vmax.f32 %v607, 0.0
      %v612 = vmax.f32 %v608, 0.0
      %v613 = vmax.f32 %v609, 0.0
      %v614 = vmax.f32 %v610, 0.0
      %615 = vst [vmem:[%s5] sm:$0xff] %v611
      %616 = vst [vmem:[%s5 + $0x8] sm:$0xff] %v612
      %617 = vst [vmem:[%s5 + $0x10] sm:$0xff] %v613
      %618 = vst [vmem:[%s5 + $0x18] sm:$0xff] %v614
    $region33: #{model_forward.3} parent=1 // pred_fallthru
      _
    // Predicated region
    $region34: #{model_forward.3} parent=1 // pred_check
      _
    $region35: #{model_forward.3} parent=1 // pred_check_branch
      %620 = sbr.rel (0) target = $region37
    $region36: #{model_forward.3} parent=1 // pred_region
      _
    $region37: #{model_forward.3} parent=1 // pred_fallthru
      _
    // Predicated region
    $region38: #{model_forward.3} parent=1 // pred_check
      _
    $region39: #{model_forward.3} parent=1 // pred_check_branch
      %622 = sbr.rel (0) target = $region41
    $region40: #{model_forward.3} parent=1 // pred_region
      _
    $region41: #{model_forward.3} parent=1 // pred_fallthru
      _
    %623 = vsyncpa [#allocation3], 1

// kernel: model_forward.5
$region0: #{model_forward.5}
  #allocation0 [shape = 'u32[]', space=smem, size = 0x4, offset = 0x4, fixed_abs, tag = 'smem constant byte address 0x4 - core index']
  #allocation1 [shape = 'u32[144,128]{1,0:T(1,128)}', space=vmem, size = 0x12000, scoped, tag = 'internal scratch']
  %s0 = inlined_call_operand.vmem [shape: bf16[8,512], index: 0, kind: input, shape index: {}]
  %s1 = inlined_call_operand.vmem [shape: bf16[512,128], index: 1, kind: input, shape index: {}]
  %s2 = inlined_call_operand.vmem [shape: f32[1,128], index: 2, kind: input, shape index: {}]
  %s3 = inlined_call_operand.vmem [shape: f32[1,128], index: 3, kind: input, shape index: {}]
  %s4 = inlined_call_operand.vmem [shape: f32[1,128], index: 4, kind: input, shape index: {}]
  %s5 = inlined_call_operand.vmem [shape: f32[8,128], index: 5, kind: output, shape index: {}]
  %s6 = sld [smem:[#allocation0]]
  $region38: #{model_forward.5} parent=0
    _
  %s8 = ssub.s32 1, %s6
  %s9 = scalar_select 0, %s8, %s6
  // Predicated region
  $region2: #{model_forward.5} parent=0 // pred_check
    _
  $region3: #{model_forward.5} parent=0 // pred_check_branch
    %11 = sbr.rel (0) target = $region5
  $region4: #{model_forward.5} parent=0 // pred_region
    _
  $region5: #{model_forward.5} parent=0 // pred_fallthru
    _
  // Predicated region
  $region6: #{model_forward.5} parent=0 // pred_check
    _
  $region7: #{model_forward.5} parent=0 // pred_check_branch
    %13 = sbr.rel (0) target = $region9
  $region8: #{model_forward.5} parent=0 // pred_region
    _
  $region9: #{model_forward.5} parent=0 // pred_fallthru
    _
  // Predicated region
  $region10: #{model_forward.5} parent=0 // pred_check
    _
  $region11: #{model_forward.5} parent=0 // pred_check_branch
    %15 = sbr.rel (0) target = $region13
  $region12: #{model_forward.5} parent=0 // pred_region
    _
  $region13: #{model_forward.5} parent=0 // pred_fallthru
    _
  // Predicated region
  $region14: #{model_forward.5} parent=0 // pred_check
    _
  $region15: #{model_forward.5} parent=0 // pred_check_branch
    %17 = sbr.rel (0) target = $region17
  $region16: #{model_forward.5} parent=0 // pred_region
    _
  $region17: #{model_forward.5} parent=0 // pred_fallthru
    _
  // Predicated region
  $region18: #{model_forward.5} parent=0 // pred_check
    _
  $region19: #{model_forward.5} parent=0 // pred_check_branch
    %19 = sbr.rel (0) target = $region21
  $region20: #{model_forward.5} parent=0 // pred_region
    _
  $region21: #{model_forward.5} parent=0 // pred_fallthru
    _
  %p21 = scmp.eq.s32.totalorder 0, 0
  // Predicated region
  $region22: #{model_forward.5} parent=0 // pred_check
    %p22 = pneg %p21
  $region23: #{model_forward.5} parent=0 // pred_check_branch
    %24 = sbr.rel (%p22) target = $region25
  $region24: #{model_forward.5} parent=0 // pred_region
    %25 = vst [vmem:[%s5] sm:$0xff] 0.0
  $region25: #{model_forward.5} parent=0 // pred_fallthru
    _
  %v26 = vld [vmem:[%s5] sm:$0xff]
  %v27 = vld [vmem:[%s0] sm:$0xff]
  %v28 = vld [vmem:[%s0 + $0x8] sm:$0xff]
  %v29 = vld [vmem:[%s1] sm:$0xf]
  %v30 = vld [vmem:[%s1 + $0x4] sm:$0xf]
  %v31 = vld [vmem:[%s1 + $0x8] sm:$0xf]
  %v32 = vld [vmem:[%s1 + $0xc] sm:$0xf]
  %v33 = vld [vmem:[%s1 + $0x10] sm:$0xf]
  %v34 = vld [vmem:[%s1 + $0x14] sm:$0xf]
  %v35 = vld [vmem:[%s1 + $0x18] sm:$0xf]
  %v36 = vld [vmem:[%s1 + $0x1c] sm:$0xf]
  %v37 = vld [vmem:[%s1 + $0x20] sm:$0xf]
  %v38 = vld [vmem:[%s1 + $0x24] sm:$0xf]
  %v39 = vld [vmem:[%s1 + $0x28] sm:$0xf]
  %v40 = vld [vmem:[%s1 + $0x2c] sm:$0xf]
  %v41 = vld [vmem:[%s1 + $0x30] sm:$0xf]
  %v42 = vld [vmem:[%s1 + $0x34] sm:$0xf]
  %v43 = vld [vmem:[%s1 + $0x38] sm:$0xf]
  %v44 = vld [vmem:[%s1 + $0x3c] sm:$0xf]
  %v45 = vld [vmem:[%s1 + $0x40] sm:$0xf]
  %v46 = vld [vmem:[%s1 + $0x44] sm:$0xf]
  %v47 = vld [vmem:[%s1 + $0x48] sm:$0xf]
  %v48 = vld [vmem:[%s1 + $0x4c] sm:$0xf]
  %v49 = vld [vmem:[%s1 + $0x50] sm:$0xf]
  %v50 = vld [vmem:[%s1 + $0x54] sm:$0xf]
  %v51 = vld [vmem:[%s1 + $0x58] sm:$0xf]
  %v52 = vld [vmem:[%s1 + $0x5c] sm:$0xf]
  %v53 = vld [vmem:[%s1 + $0x60] sm:$0xf]
  %v54 = vld [vmem:[%s1 + $0x64] sm:$0xf]
  %v55 = vld [vmem:[%s1 + $0x68] sm:$0xf]
  %v56 = vld [vmem:[%s1 + $0x6c] sm:$0xf]
  %v57 = vld [vmem:[%s1 + $0x70] sm:$0xf]
  %v58 = vld [vmem:[%s1 + $0x74] sm:$0xf]
  %v59 = vld [vmem:[%s1 + $0x78] sm:$0xf]
  %v60 = vld [vmem:[%s1 + $0x7c] sm:$0xf]
  %v61 = vld [vmem:[%s1 + $0x80] sm:$0xf]
  %v62 = vld [vmem:[%s1 + $0x84] sm:$0xf]
  %v63 = vld [vmem:[%s1 + $0x88] sm:$0xf]
  %v64 = vld [vmem:[%s1 + $0x8c] sm:$0xf]
  %v65 = vld [vmem:[%s1 + $0x90] sm:$0xf]
  %v66 = vld [vmem:[%s1 + $0x94] sm:$0xf]
  %v67 = vld [vmem:[%s1 + $0x98] sm:$0xf]
  %v68 = vld [vmem:[%s1 + $0x9c] sm:$0xf]
  %v69 = vld [vmem:[%s1 + $0xa0] sm:$0xf]
  %v70 = vld [vmem:[%s1 + $0xa4] sm:$0xf]
  %v71 = vld [vmem:[%s1 + $0xa8] sm:$0xf]
  %v72 = vld [vmem:[%s1 + $0xac] sm:$0xf]
  %v73 = vld [vmem:[%s1 + $0xb0] sm:$0xf]
  %v74 = vld [vmem:[%s1 + $0xb4] sm:$0xf]
  %v75 = vld [vmem:[%s1 + $0xb8] sm:$0xf]
  %v76 = vld [vmem:[%s1 + $0xbc] sm:$0xf]
  %v77 = vld [vmem:[%s1 + $0xc0] sm:$0xf]
  %v78 = vld [vmem:[%s1 + $0xc4] sm:$0xf]
  %v79 = vld [vmem:[%s1 + $0xc8] sm:$0xf]
  %v80 = vld [vmem:[%s1 + $0xcc] sm:$0xf]
  %v81 = vld [vmem:[%s1 + $0xd0] sm:$0xf]
  %v82 = vld [vmem:[%s1 + $0xd4] sm:$0xf]
  %v83 = vld [vmem:[%s1 + $0xd8] sm:$0xf]
  %v84 = vld [vmem:[%s1 + $0xdc] sm:$0xf]
  %v85 = vld [vmem:[%s1 + $0xe0] sm:$0xf]
  %v86 = vld [vmem:[%s1 + $0xe4] sm:$0xf]
  %v87 = vld [vmem:[%s1 + $0xe8] sm:$0xf]
  %v88 = vld [vmem:[%s1 + $0xec] sm:$0xf]
  %v89 = vld [vmem:[%s1 + $0xf0] sm:$0xf]
  %v90 = vld [vmem:[%s1 + $0xf4] sm:$0xf]
  %v91 = vld [vmem:[%s1 + $0xf8] sm:$0xf]
  %v92 = vld [vmem:[%s1 + $0xfc] sm:$0xf]
  %v95 = vunpack.c.l.b16 %v27
  %v96 = vunpack.c.h.b16 %v27
  %v97 = vunpack.c.l.b16 %v28
  %v98 = vunpack.c.h.b16 %v28
  %v99 = vpack.c.b16 %v95, %v95
  %v100 = vpack.c.b16 %v96, %v96
  %v101 = vpack.c.b16 %v97, %v97
  %v102 = vpack.c.b16 %v98, %v98
  %v171 = vunpack.c.l.b16 %v29
  %v172 = vunpack.c.l.b16 %v30
  %v173 = vunpack.c.l.b16 %v31
  %v174 = vunpack.c.l.b16 %v32
  %v175 = vunpack.c.l.b16 %v33
  %v176 = vunpack.c.l.b16 %v34
  %v177 = vunpack.c.l.b16 %v35
  %v178 = vunpack.c.l.b16 %v36
  %v179 = vunpack.c.l.b16 %v37
  %v180 = vunpack.c.l.b16 %v38
  %v181 = vunpack.c.l.b16 %v39
  %v182 = vunpack.c.l.b16 %v40
  %v183 = vunpack.c.l.b16 %v41
  %v184 = vunpack.c.l.b16 %v42
  %v185 = vunpack.c.l.b16 %v43
  %v186 = vunpack.c.l.b16 %v44
  %v187 = vunpack.c.l.b16 %v45
  %v188 = vunpack.c.l.b16 %v46
  %v189 = vunpack.c.l.b16 %v47
  %v190 = vunpack.c.l.b16 %v48
  %v191 = vunpack.c.l.b16 %v49
  %v192 = vunpack.c.l.b16 %v50
  %v193 = vunpack.c.l.b16 %v51
  %v194 = vunpack.c.l.b16 %v52
  %v195 = vunpack.c.l.b16 %v53
  %v196 = vunpack.c.l.b16 %v54
  %v197 = vunpack.c.l.b16 %v55
  %v198 = vunpack.c.l.b16 %v56
  %v199 = vunpack.c.l.b16 %v57
  %v200 = vunpack.c.l.b16 %v58
  %v201 = vunpack.c.l.b16 %v59
  %v202 = vunpack.c.l.b16 %v60
  %v203 = vunpack.c.l.b16 %v61
  %v204 = vunpack.c.l.b16 %v62
  %v205 = vunpack.c.l.b16 %v63
  %v206 = vunpack.c.l.b16 %v64
  %v207 = vunpack.c.l.b16 %v65
  %v208 = vunpack.c.l.b16 %v66
  %v209 = vunpack.c.l.b16 %v67
  %v210 = vunpack.c.l.b16 %v68
  %v211 = vunpack.c.l.b16 %v69
  %v212 = vunpack.c.l.b16 %v70
  %v213 = vunpack.c.l.b16 %v71
  %v214 = vunpack.c.l.b16 %v72
  %v215 = vunpack.c.l.b16 %v73
  %v216 = vunpack.c.l.b16 %v74
  %v217 = vunpack.c.l.b16 %v75
  %v218 = vunpack.c.l.b16 %v76
  %v219 = vunpack.c.l.b16 %v77
  %v220 = vunpack.c.l.b16 %v78
  %v221 = vunpack.c.l.b16 %v79
  %v222 = vunpack.c.l.b16 %v80
  %v223 = vunpack.c.l.b16 %v81
  %v224 = vunpack.c.l.b16 %v82
  %v225 = vunpack.c.l.b16 %v83
  %v226 = vunpack.c.l.b16 %v84
  %v227 = vunpack.c.l.b16 %v85
  %v228 = vunpack.c.l.b16 %v86
  %v229 = vunpack.c.l.b16 %v87
  %v230 = vunpack.c.l.b16 %v88
  %v231 = vunpack.c.l.b16 %v89
  %v232 = vunpack.c.l.b16 %v90
  %v233 = vunpack.c.l.b16 %v91
  %v234 = vunpack.c.l.b16 %v92
  %v235 = vpack.c.b16 %v172, %v171
  %v236 = vpack.c.b16 %v174, %v173
  %v237 = vpack.c.b16 %v176, %v175
  %v238 = vpack.c.b16 %v178, %v177
  %v239 = vpack.c.b16 %v180, %v179
  %v240 = vpack.c.b16 %v182, %v181
  %v241 = vpack.c.b16 %v184, %v183
  %v242 = vpack.c.b16 %v186, %v185
  %v243 = vpack.c.b16 %v188, %v187
  %v244 = vpack.c.b16 %v190, %v189
  %v245 = vpack.c.b16 %v192, %v191
  %v246 = vpack.c.b16 %v194, %v193
  %v247 = vpack.c.b16 %v196, %v195
  %v248 = vpack.c.b16 %v198, %v197
  %v249 = vpack.c.b16 %v200, %v199
  %v250 = vpack.c.b16 %v202, %v201
  %v251 = vpack.c.b16 %v204, %v203
  %v252 = vpack.c.b16 %v206, %v205
  %v253 = vpack.c.b16 %v208, %v207
  %v254 = vpack.c.b16 %v210, %v209
  %v255 = vpack.c.b16 %v212, %v211
  %v256 = vpack.c.b16 %v214, %v213
  %v257 = vpack.c.b16 %v216, %v215
  %v258 = vpack.c.b16 %v218, %v217
  %v259 = vpack.c.b16 %v220, %v219
  %v260 = vpack.c.b16 %v222, %v221
  %v261 = vpack.c.b16 %v224, %v223
  %v262 = vpack.c.b16 %v226, %v225
  %v263 = vpack.c.b16 %v228, %v227
  %v264 = vpack.c.b16 %v230, %v229
  %v265 = vpack.c.b16 %v232, %v231
  %v266 = vpack.c.b16 %v234, %v233
  %299 = vmatprep.subr.bf16.mxu0 0
  %300 = vmatpush1.bf16.msra.mxu0 %v235
  %301 = vmatprep.subr.bf16.mxu0 0
  %302 = vmatpush1.bf16.msra.mxu0 %v236
  %303 = vmatprep.subr.bf16.mxu0 0
  %304 = vmatpush1.bf16.msra.mxu0 %v237
  %305 = vmatprep.subr.bf16.mxu0 0
  %306 = vmatpush1.bf16.msra.mxu0 %v238
  %307 = vmatprep.subr.bf16.mxu0 0
  %308 = vmatpush1.bf16.msra.mxu0 %v239
  %309 = vmatprep.subr.bf16.mxu0 0
  %310 = vmatpush1.bf16.msra.mxu0 %v240
  %311 = vmatprep.subr.bf16.mxu0 0
  %312 = vmatpush1.bf16.msra.mxu0 %v241
  %313 = vmatprep.subr.bf16.mxu0 0
  %314 = vmatpush1.bf16.msra.mxu0 %v242
  %315 = vmatprep.subr.bf16.mxu0 0
  %316 = vmatpush1.bf16.msra.mxu0 %v243
  %317 = vmatprep.subr.bf16.mxu0 0
  %318 = vmatpush1.bf16.msra.mxu0 %v244
  %319 = vmatprep.subr.bf16.mxu0 0
  %320 = vmatpush1.bf16.msra.mxu0 %v245
  %321 = vmatprep.subr.bf16.mxu0 0
  %322 = vmatpush1.bf16.msra.mxu0 %v246
  %323 = vmatprep.subr.bf16.mxu0 0
  %324 = vmatpush1.bf16.msra.mxu0 %v247
  %325 = vmatprep.subr.bf16.mxu0 0
  %326 = vmatpush1.bf16.msra.mxu0 %v248
  %327 = vmatprep.subr.bf16.mxu0 0
  %328 = vmatpush1.bf16.msra.mxu0 %v249
  %329 = vmatprep.subr.bf16.mxu0 0
  %330 = vmatpush1.bf16.msra.mxu0 %v250
  %331 = vmatprep.mubr.bf16.mxu0 %v100
  %332 = vmatmul.mubr.bf16.gmra.mrb[0].mxu0 %v99
  %v333 = vpop.f32.mrb[0].mxu0
  %v334 = vadd.f32 0.0, %v333
  %v335 = vpop.f32.mrb[0].mxu0
  %v336 = vpop.f32.mrb[0].mxu0
  %v337 = vpop.f32.mrb[0].mxu0
  %338 = vdwg.mxu0
  %339 = vmatprep.subr.bf16.mxu0 0
  %340 = vmatpush1.bf16.msra.mxu0 %v251
  %341 = vmatprep.subr.bf16.mxu0 0
  %342 = vmatpush1.bf16.msra.mxu0 %v252
  %343 = vmatprep.subr.bf16.mxu0 0
  %344 = vmatpush1.bf16.msra.mxu0 %v253
  %345 = vmatprep.subr.bf16.mxu0 0
  %346 = vmatpush1.bf16.msra.mxu0 %v254
  %347 = vmatprep.subr.bf16.mxu0 0
  %348 = vmatpush1.bf16.msra.mxu0 %v255
  %349 = vmatprep.subr.bf16.mxu0 0
  %350 = vmatpush1.bf16.msra.mxu0 %v256
  %351 = vmatprep.subr.bf16.mxu0 0
  %352 = vmatpush1.bf16.msra.mxu0 %v257
  %353 = vmatprep.subr.bf16.mxu0 0
  %354 = vmatpush1.bf16.msra.mxu0 %v258
  %355 = vmatprep.subr.bf16.mxu0 0
  %356 = vmatpush1.bf16.msra.mxu0 %v259
  %357 = vmatprep.subr.bf16.mxu0 0
  %358 = vmatpush1.bf16.msra.mxu0 %v260
  %359 = vmatprep.subr.bf16.mxu0 0
  %360 = vmatpush1.bf16.msra.mxu0 %v261
  %361 = vmatprep.subr.bf16.mxu0 0
  %362 = vmatpush1.bf16.msra.mxu0 %v262
  %363 = vmatprep.subr.bf16.mxu0 0
  %364 = vmatpush1.bf16.msra.mxu0 %v263
  %365 = vmatprep.subr.bf16.mxu0 0
  %366 = vmatpush1.bf16.msra.mxu0 %v264
  %367 = vmatprep.subr.bf16.mxu0 0
  %368 = vmatpush1.bf16.msra.mxu0 %v265
  %369 = vmatprep.subr.bf16.mxu0 0
  %370 = vmatpush1.bf16.msra.mxu0 %v266
  %371 = vmatprep.mubr.bf16.mxu0 %v102
  %372 = vmatmul.mubr.bf16.gmra.mrb[0].mxu0 %v101
  %v373 = vpop.f32.mrb[0].mxu0
  %v374 = vadd.f32 %v334, %v373
  %v375 = vpop.f32.mrb[0].mxu0
  %v376 = vpop.f32.mrb[0].mxu0
  %v377 = vpop.f32.mrb[0].mxu0
  %378 = vdwg.mxu0
  %v379 = vadd.f32 %v26, %v374
  %380 = vst [vmem:[%s5] sm:$0xff] %v379
  // Predicated region
  $region26: #{model_forward.5} parent=0 // pred_check
    %p381 = pneg %p21
  $region27: #{model_forward.5} parent=0 // pred_check_branch
    %383 = sbr.rel (%p381) target = $region29
  $region28: #{model_forward.5} parent=0 // pred_region
    %v384 = vld [vmem:[%s5] sm:$0xff]
    %v385 = vld [vmem:[%s2] sm:$0x1]
    %v387 = vlaneseq
    %v388 = vshrl.u32 %v387, 7
    %v389 = vsub.s32 0, %v388
    %v390 = vrot.slane %v385, %v389
    %v392 = vadd.f32 %v384, %v390
    %393 = vst [vmem:[%s5] sm:$0xff] %v392
  $region29: #{model_forward.5} parent=0 // pred_fallthru
    _
  // Predicated region
  $region30: #{model_forward.5} parent=0 // pred_check
    _
  $region31: #{model_forward.5} parent=0 // pred_check_branch
    %395 = sbr.rel (0) target = $region33
  $region32: #{model_forward.5} parent=0 // pred_region
    _
  $region33: #{model_forward.5} parent=0 // pred_fallthru
    _
  // Predicated region
  $region34: #{model_forward.5} parent=0 // pred_check
    _
  $region35: #{model_forward.5} parent=0 // pred_check_branch
    %397 = sbr.rel (0) target = $region37
  $region36: #{model_forward.5} parent=0 // pred_region
    _
  $region37: #{model_forward.5} parent=0 // pred_fallthru
    _

// kernel: model_forward.4
$region0: #{model_forward.4}
  #allocation0 [shape = 'u32[]', space=smem, size = 0x4, offset = 0x4, fixed_abs, tag = 'smem constant byte address 0x4 - core index']
  #allocation1 [shape = 'u32[144,128]{1,0:T(1,128)}', space=vmem, size = 0x12000, scoped, tag = 'internal scratch']
  %s0 = inlined_call_operand.vmem [shape: bf16[8,512], index: 0, kind: input, shape index: {}]
  %s1 = inlined_call_operand.vmem [shape: bf16[512,512], index: 1, kind: input, shape index: {}]
  %s2 = inlined_call_operand.vmem [shape: f32[1,512], index: 2, kind: input, shape index: {}]
  %s3 = inlined_call_operand.vmem [shape: f32[1,512], index: 3, kind: input, shape index: {}]
  %s4 = inlined_call_operand.vmem [shape: f32[1,512], index: 4, kind: input, shape index: {}]
  %s5 = inlined_call_operand.vmem [shape: f32[8,512], index: 5, kind: output, shape index: {}]
  %s6 = sld [smem:[#allocation0]]
  $region38: #{model_forward.4} parent=0
    _
  %s8 = ssub.s32 1, %s6
  %s9 = scalar_select 0, %s8, %s6
  // Predicated region
  $region2: #{model_forward.4} parent=0 // pred_check
    _
  $region3: #{model_forward.4} parent=0 // pred_check_branch
    %11 = sbr.rel (0) target = $region5
  $region4: #{model_forward.4} parent=0 // pred_region
    _
  $region5: #{model_forward.4} parent=0 // pred_fallthru
    _
  // Predicated region
  $region6: #{model_forward.4} parent=0 // pred_check
    _
  $region7: #{model_forward.4} parent=0 // pred_check_branch
    %13 = sbr.rel (0) target = $region9
  $region8: #{model_forward.4} parent=0 // pred_region
    _
  $region9: #{model_forward.4} parent=0 // pred_fallthru
    _
  // Predicated region
  $region10: #{model_forward.4} parent=0 // pred_check
    _
  $region11: #{model_forward.4} parent=0 // pred_check_branch
    %15 = sbr.rel (0) target = $region13
  $region12: #{model_forward.4} parent=0 // pred_region
    _
  $region13: #{model_forward.4} parent=0 // pred_fallthru
    _
  // Predicated region
  $region14: #{model_forward.4} parent=0 // pred_check
    _
  $region15: #{model_forward.4} parent=0 // pred_check_branch
    %17 = sbr.rel (0) target = $region17
  $region16: #{model_forward.4} parent=0 // pred_region
    _
  $region17: #{model_forward.4} parent=0 // pred_fallthru
    _
  // Predicated region
  $region18: #{model_forward.4} parent=0 // pred_check
    _
  $region19: #{model_forward.4} parent=0 // pred_check_branch
    %19 = sbr.rel (0) target = $region21
  $region20: #{model_forward.4} parent=0 // pred_region
    _
  $region21: #{model_forward.4} parent=0 // pred_fallthru
    _
  %p20 = scmp.eq.s32.totalorder 0, 0
  // Predicated region
  $region22: #{model_forward.4} parent=0 // pred_check
    %p21 = pneg %p20
  $region23: #{model_forward.4} parent=0 // pred_check_branch
    %23 = sbr.rel (%p21) target = $region25
  $region24: #{model_forward.4} parent=0 // pred_region
    %24 = vst [vmem:[%s5] sm:$0xff] 0.0
    %25 = vst [vmem:[%s5 + $0x8] sm:$0xff] 0.0
    %26 = vst [vmem:[%s5 + $0x10] sm:$0xff] 0.0
    %27 = vst [vmem:[%s5 + $0x18] sm:$0xff] 0.0
  $region25: #{model_forward.4} parent=0 // pred_fallthru
    _
  %v28 = vld [vmem:[%s5] sm:$0xff]
  %v29 = vld [vmem:[%s5 + $0x8] sm:$0xff]
  %v30 = vld [vmem:[%s5 + $0x10] sm:$0xff]
  %v31 = vld [vmem:[%s5 + $0x18] sm:$0xff]
  %v32 = vld [vmem:[%s0] sm:$0xff]
  %v33 = vld [vmem:[%s0 + $0x8] sm:$0xff]
  %v34 = vld [vmem:[%s1] sm:$0xff]
  %v35 = vld [vmem:[%s1 + $0x8] sm:$0xff]
  %v36 = vld [vmem:[%s1 + $0x10] sm:$0xff]
  %v37 = vld [vmem:[%s1 + $0x18] sm:$0xff]
  %v38 = vld [vmem:[%s1 + $0x20] sm:$0xff]
  %v39 = vld [vmem:[%s1 + $0x28] sm:$0xff]
  %v40 = vld [vmem:[%s1 + $0x30] sm:$0xff]
  %v41 = vld [vmem:[%s1 + $0x38] sm:$0xff]
  %v42 = vld [vmem:[%s1 + $0x40] sm:$0xff]
  %v43 = vld [vmem:[%s1 + $0x48] sm:$0xff]
  %v44 = vld [vmem:[%s1 + $0x50] sm:$0xff]
  %v45 = vld [vmem:[%s1 + $0x58] sm:$0xff]
  %v46 = vld [vmem:[%s1 + $0x60] sm:$0xff]
  %v47 = vld [vmem:[%s1 + $0x68] sm:$0xff]
  %v48 = vld [vmem:[%s1 + $0x70] sm:$0xff]
  %v49 = vld [vmem:[%s1 + $0x78] sm:$0xff]
  %v50 = vld [vmem:[%s1 + $0x80] sm:$0xff]
  %v51 = vld [vmem:[%s1 + $0x88] sm:$0xff]
  %v52 = vld [vmem:[%s1 + $0x90] sm:$0xff]
  %v53 = vld [vmem:[%s1 + $0x98] sm:$0xff]
  %v54 = vld [vmem:[%s1 + $0xa0] sm:$0xff]
  %v55 = vld [vmem:[%s1 + $0xa8] sm:$0xff]
  %v56 = vld [vmem:[%s1 + $0xb0] sm:$0xff]
  %v57 = vld [vmem:[%s1 + $0xb8] sm:$0xff]
  %v58 = vld [vmem:[%s1 + $0xc0] sm:$0xff]
  %v59 = vld [vmem:[%s1 + $0xc8] sm:$0xff]
  %v60 = vld [vmem:[%s1 + $0xd0] sm:$0xff]
  %v61 = vld [vmem:[%s1 + $0xd8] sm:$0xff]
  %v62 = vld [vmem:[%s1 + $0xe0] sm:$0xff]
  %v63 = vld [vmem:[%s1 + $0xe8] sm:$0xff]
  %v64 = vld [vmem:[%s1 + $0xf0] sm:$0xff]
  %v65 = vld [vmem:[%s1 + $0xf8] sm:$0xff]
  %v66 = vld [vmem:[%s1 + $0x100] sm:$0xff]
  %v67 = vld [vmem:[%s1 + $0x108] sm:$0xff]
  %v68 = vld [vmem:[%s1 + $0x110] sm:$0xff]
  %v69 = vld [vmem:[%s1 + $0x118] sm:$0xff]
  %v70 = vld [vmem:[%s1 + $0x120] sm:$0xff]
  %v71 = vld [vmem:[%s1 + $0x128] sm:$0xff]
  %v72 = vld [vmem:[%s1 + $0x130] sm:$0xff]
  %v73 = vld [vmem:[%s1 + $0x138] sm:$0xff]
  %v74 = vld [vmem:[%s1 + $0x140] sm:$0xff]
  %v75 = vld [vmem:[%s1 + $0x148] sm:$0xff]
  %v76 = vld [vmem:[%s1 + $0x150] sm:$0xff]
  %v77 = vld [vmem:[%s1 + $0x158] sm:$0xff]
  %v78 = vld [vmem:[%s1 + $0x160] sm:$0xff]
  %v79 = vld [vmem:[%s1 + $0x168] sm:$0xff]
  %v80 = vld [vmem:[%s1 + $0x170] sm:$0xff]
  %v81 = vld [vmem:[%s1 + $0x178] sm:$0xff]
  %v82 = vld [vmem:[%s1 + $0x180] sm:$0xff]
  %v83 = vld [vmem:[%s1 + $0x188] sm:$0xff]
  %v84 = vld [vmem:[%s1 + $0x190] sm:$0xff]
  %v85 = vld [vmem:[%s1 + $0x198] sm:$0xff]
  %v86 = vld [vmem:[%s1 + $0x1a0] sm:$0xff]
  %v87 = vld [vmem:[%s1 + $0x1a8] sm:$0xff]
  %v88 = vld [vmem:[%s1 + $0x1b0] sm:$0xff]
  %v89 = vld [vmem:[%s1 + $0x1b8] sm:$0xff]
  %v90 = vld [vmem:[%s1 + $0x1c0] sm:$0xff]
  %v91 = vld [vmem:[%s1 + $0x1c8] sm:$0xff]
  %v92 = vld [vmem:[%s1 + $0x1d0] sm:$0xff]
  %v93 = vld [vmem:[%s1 + $0x1d8] sm:$0xff]
  %v94 = vld [vmem:[%s1 + $0x1e0] sm:$0xff]
  %v95 = vld [vmem:[%s1 + $0x1e8] sm:$0xff]
  %v96 = vld [vmem:[%s1 + $0x1f0] sm:$0xff]
  %v97 = vld [vmem:[%s1 + $0x1f8] sm:$0xff]
  %v98 = vld [vmem:[%s1 + $0x200] sm:$0xff]
  %v99 = vld [vmem:[%s1 + $0x208] sm:$0xff]
  %v100 = vld [vmem:[%s1 + $0x210] sm:$0xff]
  %v101 = vld [vmem:[%s1 + $0x218] sm:$0xff]
  %v102 = vld [vmem:[%s1 + $0x220] sm:$0xff]
  %v103 = vld [vmem:[%s1 + $0x228] sm:$0xff]
  %v104 = vld [vmem:[%s1 + $0x230] sm:$0xff]
  %v105 = vld [vmem:[%s1 + $0x238] sm:$0xff]
  %v106 = vld [vmem:[%s1 + $0x240] sm:$0xff]
  %v107 = vld [vmem:[%s1 + $0x248] sm:$0xff]
  %v108 = vld [vmem:[%s1 + $0x250] sm:$0xff]
  %v109 = vld [vmem:[%s1 + $0x258] sm:$0xff]
  %v110 = vld [vmem:[%s1 + $0x260] sm:$0xff]
  %v111 = vld [vmem:[%s1 + $0x268] sm:$0xff]
  %v112 = vld [vmem:[%s1 + $0x270] sm:$0xff]
  %v113 = vld [vmem:[%s1 + $0x278] sm:$0xff]
  %v114 = vld [vmem:[%s1 + $0x280] sm:$0xff]
  %v115 = vld [vmem:[%s1 + $0x288] sm:$0xff]
  %v116 = vld [vmem:[%s1 + $0x290] sm:$0xff]
  %v117 = vld [vmem:[%s1 + $0x298] sm:$0xff]
  %v118 = vld [vmem:[%s1 + $0x2a0] sm:$0xff]
  %v119 = vld [vmem:[%s1 + $0x2a8] sm:$0xff]
  %v120 = vld [vmem:[%s1 + $0x2b0] sm:$0xff]
  %v121 = vld [vmem:[%s1 + $0x2b8] sm:$0xff]
  %v122 = vld [vmem:[%s1 + $0x2c0] sm:$0xff]
  %v123 = vld [vmem:[%s1 + $0x2c8] sm:$0xff]
  %v124 = vld [vmem:[%s1 + $0x2d0] sm:$0xff]
  %v125 = vld [vmem:[%s1 + $0x2d8] sm:$0xff]
  %v126 = vld [vmem:[%s1 + $0x2e0] sm:$0xff]
  %v127 = vld [vmem:[%s1 + $0x2e8] sm:$0xff]
  %v128 = vld [vmem:[%s1 + $0x2f0] sm:$0xff]
  %v129 = vld [vmem:[%s1 + $0x2f8] sm:$0xff]
  %v130 = vld [vmem:[%s1 + $0x300] sm:$0xff]
  %v131 = vld [vmem:[%s1 + $0x308] sm:$0xff]
  %v132 = vld [vmem:[%s1 + $0x310] sm:$0xff]
  %v133 = vld [vmem:[%s1 + $0x318] sm:$0xff]
  %v134 = vld [vmem:[%s1 + $0x320] sm:$0xff]
  %v135 = vld [vmem:[%s1 + $0x328] sm:$0xff]
  %v136 = vld [vmem:[%s1 + $0x330] sm:$0xff]
  %v137 = vld [vmem:[%s1 + $0x338] sm:$0xff]
  %v138 = vld [vmem:[%s1 + $0x340] sm:$0xff]
  %v139 = vld [vmem:[%s1 + $0x348] sm:$0xff]
  %v140 = vld [vmem:[%s1 + $0x350] sm:$0xff]
  %v141 = vld [vmem:[%s1 + $0x358] sm:$0xff]
  %v142 = vld [vmem:[%s1 + $0x360] sm:$0xff]
  %v143 = vld [vmem:[%s1 + $0x368] sm:$0xff]
  %v144 = vld [vmem:[%s1 + $0x370] sm:$0xff]
  %v145 = vld [vmem:[%s1 + $0x378] sm:$0xff]
  %v146 = vld [vmem:[%s1 + $0x380] sm:$0xff]
  %v147 = vld [vmem:[%s1 + $0x388] sm:$0xff]
  %v148 = vld [vmem:[%s1 + $0x390] sm:$0xff]
  %v149 = vld [vmem:[%s1 + $0x398] sm:$0xff]
  %v150 = vld [vmem:[%s1 + $0x3a0] sm:$0xff]
  %v151 = vld [vmem:[%s1 + $0x3a8] sm:$0xff]
  %v152 = vld [vmem:[%s1 + $0x3b0] sm:$0xff]
  %v153 = vld [vmem:[%s1 + $0x3b8] sm:$0xff]
  %v154 = vld [vmem:[%s1 + $0x3c0] sm:$0xff]
  %v155 = vld [vmem:[%s1 + $0x3c8] sm:$0xff]
  %v156 = vld [vmem:[%s1 + $0x3d0] sm:$0xff]
  %v157 = vld [vmem:[%s1 + $0x3d8] sm:$0xff]
  %v158 = vld [vmem:[%s1 + $0x3e0] sm:$0xff]
  %v159 = vld [vmem:[%s1 + $0x3e8] sm:$0xff]
  %v160 = vld [vmem:[%s1 + $0x3f0] sm:$0xff]
  %v161 = vld [vmem:[%s1 + $0x3f8] sm:$0xff]
  %v164 = vunpack.c.l.b16 %v32
  %v165 = vunpack.c.h.b16 %v32
  %v166 = vunpack.c.l.b16 %v33
  %v167 = vunpack.c.h.b16 %v33
  %v168 = vpack.c.b16 %v164, %v164
  %v169 = vpack.c.b16 %v165, %v165
  %v170 = vpack.c.b16 %v166, %v166
  %v171 = vpack.c.b16 %v167, %v167
  %v304 = vunpack.c.l.b16 %v34
  %v305 = vunpack.c.h.b16 %v34
  %v306 = vunpack.c.l.b16 %v35
  %v307 = vunpack.c.h.b16 %v35
  %v308 = vunpack.c.l.b16 %v36
  %v309 = vunpack.c.h.b16 %v36
  %v310 = vunpack.c.l.b16 %v37
  %v311 = vunpack.c.h.b16 %v37
  %v312 = vunpack.c.l.b16 %v38
  %v313 = vunpack.c.h.b16 %v38
  %v314 = vunpack.c.l.b16 %v39
  %v315 = vunpack.c.h.b16 %v39
  %v316 = vunpack.c.l.b16 %v40
  %v317 = vunpack.c.h.b16 %v40
  %v318 = vunpack.c.l.b16 %v41
  %v319 = vunpack.c.h.b16 %v41
  %v320 = vunpack.c.l.b16 %v42
  %v321 = vunpack.c.h.b16 %v42
  %v322 = vunpack.c.l.b16 %v43
  %v323 = vunpack.c.h.b16 %v43
  %v324 = vunpack.c.l.b16 %v44
  %v325 = vunpack.c.h.b16 %v44
  %v326 = vunpack.c.l.b16 %v45
  %v327 = vunpack.c.h.b16 %v45
  %v328 = vunpack.c.l.b16 %v46
  %v329 = vunpack.c.h.b16 %v46
  %v330 = vunpack.c.l.b16 %v47
  %v331 = vunpack.c.h.b16 %v47
  %v332 = vunpack.c.l.b16 %v48
  %v333 = vunpack.c.h.b16 %v48
  %v334 = vunpack.c.l.b16 %v49
  %v335 = vunpack.c.h.b16 %v49
  %v336 = vunpack.c.l.b16 %v50
  %v337 = vunpack.c.h.b16 %v50
  %v338 = vunpack.c.l.b16 %v51
  %v339 = vunpack.c.h.b16 %v51
  %v340 = vunpack.c.l.b16 %v52
  %v341 = vunpack.c.h.b16 %v52
  %v342 = vunpack.c.l.b16 %v53
  %v343 = vunpack.c.h.b16 %v53
  %v344 = vunpack.c.l.b16 %v54
  %v345 = vunpack.c.h.b16 %v54
  %v346 = vunpack.c.l.b16 %v55
  %v347 = vunpack.c.h.b16 %v55
  %v348 = vunpack.c.l.b16 %v56
  %v349 = vunpack.c.h.b16 %v56
  %v350 = vunpack.c.l.b16 %v57
  %v351 = vunpack.c.h.b16 %v57
  %v352 = vunpack.c.l.b16 %v58
  %v353 = vunpack.c.h.b16 %v58
  %v354 = vunpack.c.l.b16 %v59
  %v355 = vunpack.c.h.b16 %v59
  %v356 = vunpack.c.l.b16 %v60
  %v357 = vunpack.c.h.b16 %v60
  %v358 = vunpack.c.l.b16 %v61
  %v359 = vunpack.c.h.b16 %v61
  %v360 = vunpack.c.l.b16 %v62
  %v361 = vunpack.c.h.b16 %v62
  %v362 = vunpack.c.l.b16 %v63
  %v363 = vunpack.c.h.b16 %v63
  %v364 = vunpack.c.l.b16 %v64
  %v365 = vunpack.c.h.b16 %v64
  %v366 = vunpack.c.l.b16 %v65
  %v367 = vunpack.c.h.b16 %v65
  %v368 = vunpack.c.l.b16 %v66
  %v369 = vunpack.c.h.b16 %v66
  %v370 = vunpack.c.l.b16 %v67
  %v371 = vunpack.c.h.b16 %v67
  %v372 = vunpack.c.l.b16 %v68
  %v373 = vunpack.c.h.b16 %v68
  %v374 = vunpack.c.l.b16 %v69
  %v375 = vunpack.c.h.b16 %v69
  %v376 = vunpack.c.l.b16 %v70
  %v377 = vunpack.c.h.b16 %v70
  %v378 = vunpack.c.l.b16 %v71
  %v379 = vunpack.c.h.b16 %v71
  %v380 = vunpack.c.l.b16 %v72
  %v381 = vunpack.c.h.b16 %v72
  %v382 = vunpack.c.l.b16 %v73
  %v383 = vunpack.c.h.b16 %v73
  %v384 = vunpack.c.l.b16 %v74
  %v385 = vunpack.c.h.b16 %v74
  %v386 = vunpack.c.l.b16 %v75
  %v387 = vunpack.c.h.b16 %v75
  %v388 = vunpack.c.l.b16 %v76
  %v389 = vunpack.c.h.b16 %v76
  %v390 = vunpack.c.l.b16 %v77
  %v391 = vunpack.c.h.b16 %v77
  %v392 = vunpack.c.l.b16 %v78
  %v393 = vunpack.c.h.b16 %v78
  %v394 = vunpack.c.l.b16 %v79
  %v395 = vunpack.c.h.b16 %v79
  %v396 = vunpack.c.l.b16 %v80
  %v397 = vunpack.c.h.b16 %v80
  %v398 = vunpack.c.l.b16 %v81
  %v399 = vunpack.c.h.b16 %v81
  %v400 = vunpack.c.l.b16 %v82
  %v401 = vunpack.c.h.b16 %v82
  %v402 = vunpack.c.l.b16 %v83
  %v403 = vunpack.c.h.b16 %v83
  %v404 = vunpack.c.l.b16 %v84
  %v405 = vunpack.c.h.b16 %v84
  %v406 = vunpack.c.l.b16 %v85
  %v407 = vunpack.c.h.b16 %v85
  %v408 = vunpack.c.l.b16 %v86
  %v409 = vunpack.c.h.b16 %v86
  %v410 = vunpack.c.l.b16 %v87
  %v411 = vunpack.c.h.b16 %v87
  %v412 = vunpack.c.l.b16 %v88
  %v413 = vunpack.c.h.b16 %v88
  %v414 = vunpack.c.l.b16 %v89
  %v415 = vunpack.c.h.b16 %v89
  %v416 = vunpack.c.l.b16 %v90
  %v417 = vunpack.c.h.b16 %v90
  %v418 = vunpack.c.l.b16 %v91
  %v419 = vunpack.c.h.b16 %v91
  %v420 = vunpack.c.l.b16 %v92
  %v421 = vunpack.c.h.b16 %v92
  %v422 = vunpack.c.l.b16 %v93
  %v423 = vunpack.c.h.b16 %v93
  %v424 = vunpack.c.l.b16 %v94
  %v425 = vunpack.c.h.b16 %v94
  %v426 = vunpack.c.l.b16 %v95
  %v427 = vunpack.c.h.b16 %v95
  %v428 = vunpack.c.l.b16 %v96
  %v429 = vunpack.c.h.b16 %v96
  %v430 = vunpack.c.l.b16 %v97
  %v431 = vunpack.c.h.b16 %v97
  %v432 = vunpack.c.l.b16 %v98
  %v433 = vunpack.c.h.b16 %v98
  %v434 = vunpack.c.l.b16 %v99
  %v435 = vunpack.c.h.b16 %v99
  %v436 = vunpack.c.l.b16 %v100
  %v437 = vunpack.c.h.b16 %v100
  %v438 = vunpack.c.l.b16 %v101
  %v439 = vunpack.c.h.b16 %v101
  %v440 = vunpack.c.l.b16 %v102
  %v441 = vunpack.c.h.b16 %v102
  %v442 = vunpack.c.l.b16 %v103
  %v443 = vunpack.c.h.b16 %v103
  %v444 = vunpack.c.l.b16 %v104
  %v445 = vunpack.c.h.b16 %v104
  %v446 = vunpack.c.l.b16 %v105
  %v447 = vunpack.c.h.b16 %v105
  %v448 = vunpack.c.l.b16 %v106
  %v449 = vunpack.c.h.b16 %v106
  %v450 = vunpack.c.l.b16 %v107
  %v451 = vunpack.c.h.b16 %v107
  %v452 = vunpack.c.l.b16 %v108
  %v453 = vunpack.c.h.b16 %v108
  %v454 = vunpack.c.l.b16 %v109
  %v455 = vunpack.c.h.b16 %v109
  %v456 = vunpack.c.l.b16 %v110
  %v457 = vunpack.c.h.b16 %v110
  %v458 = vunpack.c.l.b16 %v111
  %v459 = vunpack.c.h.b16 %v111
  %v460 = vunpack.c.l.b16 %v112
  %v461 = vunpack.c.h.b16 %v112
  %v462 = vunpack.c.l.b16 %v113
  %v463 = vunpack.c.h.b16 %v113
  %v464 = vunpack.c.l.b16 %v114
  %v465 = vunpack.c.h.b16 %v114
  %v466 = vunpack.c.l.b16 %v115
  %v467 = vunpack.c.h.b16 %v115
  %v468 = vunpack.c.l.b16 %v116
  %v469 = vunpack.c.h.b16 %v116
  %v470 = vunpack.c.l.b16 %v117
  %v471 = vunpack.c.h.b16 %v117
  %v472 = vunpack.c.l.b16 %v118
  %v473 = vunpack.c.h.b16 %v118
  %v474 = vunpack.c.l.b16 %v119
  %v475 = vunpack.c.h.b16 %v119
  %v476 = vunpack.c.l.b16 %v120
  %v477 = vunpack.c.h.b16 %v120
  %v478 = vunpack.c.l.b16 %v121
  %v479 = vunpack.c.h.b16 %v121
  %v480 = vunpack.c.l.b16 %v122
  %v481 = vunpack.c.h.b16 %v122
  %v482 = vunpack.c.l.b16 %v123
  %v483 = vunpack.c.h.b16 %v123
  %v484 = vunpack.c.l.b16 %v124
  %v485 = vunpack.c.h.b16 %v124
  %v486 = vunpack.c.l.b16 %v125
  %v487 = vunpack.c.h.b16 %v125
  %v488 = vunpack.c.l.b16 %v126
  %v489 = vunpack.c.h.b16 %v126
  %v490 = vunpack.c.l.b16 %v127
  %v491 = vunpack.c.h.b16 %v127
  %v492 = vunpack.c.l.b16 %v128
  %v493 = vunpack.c.h.b16 %v128
  %v494 = vunpack.c.l.b16 %v129
  %v495 = vunpack.c.h.b16 %v129
  %v496 = vunpack.c.l.b16 %v130
  %v497 = vunpack.c.h.b16 %v130
  %v498 = vunpack.c.l.b16 %v131
  %v499 = vunpack.c.h.b16 %v131
  %v500 = vunpack.c.l.b16 %v132
  %v501 = vunpack.c.h.b16 %v132
  %v502 = vunpack.c.l.b16 %v133
  %v503 = vunpack.c.h.b16 %v133
  %v504 = vunpack.c.l.b16 %v134
  %v505 = vunpack.c.h.b16 %v134
  %v506 = vunpack.c.l.b16 %v135
  %v507 = vunpack.c.h.b16 %v135
  %v508 = vunpack.c.l.b16 %v136
  %v509 = vunpack.c.h.b16 %v136
  %v510 = vunpack.c.l.b16 %v137
  %v511 = vunpack.c.h.b16 %v137
  %v512 = vunpack.c.l.b16 %v138
  %v513 = vunpack.c.h.b16 %v138
  %v514 = vunpack.c.l.b16 %v139
  %v515 = vunpack.c.h.b16 %v139
  %v516 = vunpack.c.l.b16 %v140
  %v517 = vunpack.c.h.b16 %v140
  %v518 = vunpack.c.l.b16 %v141
  %v519 = vunpack.c.h.b16 %v141
  %v520 = vunpack.c.l.b16 %v142
  %v521 = vunpack.c.h.b16 %v142
  %v522 = vunpack.c.l.b16 %v143
  %v523 = vunpack.c.h.b16 %v143
  %v524 = vunpack.c.l.b16 %v144
  %v525 = vunpack.c.h.b16 %v144
  %v526 = vunpack.c.l.b16 %v145
  %v527 = vunpack.c.h.b16 %v145
  %v528 = vunpack.c.l.b16 %v146
  %v529 = vunpack.c.h.b16 %v146
  %v530 = vunpack.c.l.b16 %v147
  %v531 = vunpack.c.h.b16 %v147
  %v532 = vunpack.c.l.b16 %v148
  %v533 = vunpack.c.h.b16 %v148
  %v534 = vunpack.c.l.b16 %v149
  %v535 = vunpack.c.h.b16 %v149
  %v536 = vunpack.c.l.b16 %v150
  %v537 = vunpack.c.h.b16 %v150
  %v538 = vunpack.c.l.b16 %v151
  %v539 = vunpack.c.h.b16 %v151
  %v540 = vunpack.c.l.b16 %v152
  %v541 = vunpack.c.h.b16 %v152
  %v542 = vunpack.c.l.b16 %v153
  %v543 = vunpack.c.h.b16 %v153
  %v544 = vunpack.c.l.b16 %v154
  %v545 = vunpack.c.h.b16 %v154
  %v546 = vunpack.c.l.b16 %v155
  %v547 = vunpack.c.h.b16 %v155
  %v548 = vunpack.c.l.b16 %v156
  %v549 = vunpack.c.h.b16 %v156
  %v550 = vunpack.c.l.b16 %v157
  %v551 = vunpack.c.h.b16 %v157
  %v552 = vunpack.c.l.b16 %v158
  %v553 = vunpack.c.h.b16 %v158
  %v554 = vunpack.c.l.b16 %v159
  %v555 = vunpack.c.h.b16 %v159
  %v556 = vunpack.c.l.b16 %v160
  %v557 = vunpack.c.h.b16 %v160
  %v558 = vunpack.c.l.b16 %v161
  %v559 = vunpack.c.h.b16 %v161
  %v560 = vpack.c.b16 %v308, %v304
  %v561 = vpack.c.b16 %v309, %v305
  %v562 = vpack.c.b16 %v310, %v306
  %v563 = vpack.c.b16 %v311, %v307
  %v564 = vpack.c.b16 %v316, %v312
  %v565 = vpack.c.b16 %v317, %v313
  %v566 = vpack.c.b16 %v318, %v314
  %v567 = vpack.c.b16 %v319, %v315
  %v568 = vpack.c.b16 %v324, %v320
  %v569 = vpack.c.b16 %v325, %v321
  %v570 = vpack.c.b16 %v326, %v322
  %v571 = vpack.c.b16 %v327, %v323
  %v572 = vpack.c.b16 %v332, %v328
  %v573 = vpack.c.b16 %v333, %v329
  %v574 = vpack.c.b16 %v334, %v330
  %v575 = vpack.c.b16 %v335, %v331
  %v576 = vpack.c.b16 %v340, %v336
  %v577 = vpack.c.b16 %v341, %v337
  %v578 = vpack.c.b16 %v342, %v338
  %v579 = vpack.c.b16 %v343, %v339
  %v580 = vpack.c.b16 %v348, %v344
  %v581 = vpack.c.b16 %v349, %v345
  %v582 = vpack.c.b16 %v350, %v346
  %v583 = vpack.c.b16 %v351, %v347
  %v584 = vpack.c.b16 %v356, %v352
  %v585 = vpack.c.b16 %v357, %v353
  %v586 = vpack.c.b16 %v358, %v354
  %v587 = vpack.c.b16 %v359, %v355
  %v588 = vpack.c.b16 %v364, %v360
  %v589 = vpack.c.b16 %v365, %v361
  %v590 = vpack.c.b16 %v366, %v362
  %v591 = vpack.c.b16 %v367, %v363
  %v592 = vpack.c.b16 %v372, %v368
  %v593 = vpack.c.b16 %v373, %v369
  %v594 = vpack.c.b16 %v374, %v370
  %v595 = vpack.c.b16 %v375, %v371
  %v596 = vpack.c.b16 %v380, %v376
  %v597 = vpack.c.b16 %v381, %v377
  %v598 = vpack.c.b16 %v382, %v378
  %v599 = vpack.c.b16 %v383, %v379
  %v600 = vpack.c.b16 %v388, %v384
  %v601 = vpack.c.b16 %v389, %v385
  %v602 = vpack.c.b16 %v390, %v386
  %v603 = vpack.c.b16 %v391, %v387
  %v604 = vpack.c.b16 %v396, %v392
  %v605 = vpack.c.b16 %v397, %v393
  %v606 = vpack.c.b16 %v398, %v394
  %v607 = vpack.c.b16 %v399, %v395
  %v608 = vpack.c.b16 %v404, %v400
  %v609 = vpack.c.b16 %v405, %v401
  %v610 = vpack.c.b16 %v406, %v402
  %v611 = vpack.c.b16 %v407, %v403
  %v612 = vpack.c.b16 %v412, %v408
  %v613 = vpack.c.b16 %v413, %v409
  %v614 = vpack.c.b16 %v414, %v410
  %v615 = vpack.c.b16 %v415, %v411
  %v616 = vpack.c.b16 %v420, %v416
  %v617 = vpack.c.b16 %v421, %v417
  %v618 = vpack.c.b16 %v422, %v418
  %v619 = vpack.c.b16 %v423, %v419
  %v620 = vpack.c.b16 %v428, %v424
  %v621 = vpack.c.b16 %v429, %v425
  %v622 = vpack.c.b16 %v430, %v426
  %v623 = vpack.c.b16 %v431, %v427
  %v624 = vpack.c.b16 %v436, %v432
  %v625 = vpack.c.b16 %v437, %v433
  %v626 = vpack.c.b16 %v438, %v434
  %v627 = vpack.c.b16 %v439, %v435
  %v628 = vpack.c.b16 %v444, %v440
  %v629 = vpack.c.b16 %v445, %v441
  %v630 = vpack.c.b16 %v446, %v442
  %v631 = vpack.c.b16 %v447, %v443
  %v632 = vpack.c.b16 %v452, %v448
  %v633 = vpack.c.b16 %v453, %v449
  %v634 = vpack.c.b16 %v454, %v450
  %v635 = vpack.c.b16 %v455, %v451
  %v636 = vpack.c.b16 %v460, %v456
  %v637 = vpack.c.b16 %v461, %v457
  %v638 = vpack.c.b16 %v462, %v458
  %v639 = vpack.c.b16 %v463, %v459
  %v640 = vpack.c.b16 %v468, %v464
  %v641 = vpack.c.b16 %v469, %v465
  %v642 = vpack.c.b16 %v470, %v466
  %v643 = vpack.c.b16 %v471, %v467
  %v644 = vpack.c.b16 %v476, %v472
  %v645 = vpack.c.b16 %v477, %v473
  %v646 = vpack.c.b16 %v478, %v474
  %v647 = vpack.c.b16 %v479, %v475
  %v648 = vpack.c.b16 %v484, %v480
  %v649 = vpack.c.b16 %v485, %v481
  %v650 = vpack.c.b16 %v486, %v482
  %v651 = vpack.c.b16 %v487, %v483
  %v652 = vpack.c.b16 %v492, %v488
  %v653 = vpack.c.b16 %v493, %v489
  %v654 = vpack.c.b16 %v494, %v490
  %v655 = vpack.c.b16 %v495, %v491
  %v656 = vpack.c.b16 %v500, %v496
  %v657 = vpack.c.b16 %v501, %v497
  %v658 = vpack.c.b16 %v502, %v498
  %v659 = vpack.c.b16 %v503, %v499
  %v660 = vpack.c.b16 %v508, %v504
  %v661 = vpack.c.b16 %v509, %v505
  %v662 = vpack.c.b16 %v510, %v506
  %v663 = vpack.c.b16 %v511, %v507
  %v664 = vpack.c.b16 %v516, %v512
  %v665 = vpack.c.b16 %v517, %v513
  %v666 = vpack.c.b16 %v518, %v514
  %v667 = vpack.c.b16 %v519, %v515
  %v668 = vpack.c.b16 %v524, %v520
  %v669 = vpack.c.b16 %v525, %v521
  %v670 = vpack.c.b16 %v526, %v522
  %v671 = vpack.c.b16 %v527, %v523
  %v672 = vpack.c.b16 %v532, %v528
  %v673 = vpack.c.b16 %v533, %v529
  %v674 = vpack.c.b16 %v534, %v530
  %v675 = vpack.c.b16 %v535, %v531
  %v676 = vpack.c.b16 %v540, %v536
  %v677 = vpack.c.b16 %v541, %v537
  %v678 = vpack.c.b16 %v542, %v538
  %v679 = vpack.c.b16 %v543, %v539
  %v680 = vpack.c.b16 %v548, %v544
  %v681 = vpack.c.b16 %v549, %v545
  %v682 = vpack.c.b16 %v550, %v546
  %v683 = vpack.c.b16 %v551, %v547
  %v684 = vpack.c.b16 %v556, %v552
  %v685 = vpack.c.b16 %v557, %v553
  %v686 = vpack.c.b16 %v558, %v554
  %v687 = vpack.c.b16 %v559, %v555
  %816 = vmatprep.subr.bf16.mxu0 %v561
  %817 = vmatpush1.bf16.msra.mxu0 %v560
  %818 = vmatprep.subr.bf16.mxu0 %v565
  %819 = vmatpush1.bf16.msra.mxu0 %v564
  %820 = vmatprep.subr.bf16.mxu0 %v569
  %821 = vmatpush1.bf16.msra.mxu0 %v568
  %822 = vmatprep.subr.bf16.mxu0 %v573
  %823 = vmatpush1.bf16.msra.mxu0 %v572
  %824 = vmatprep.subr.bf16.mxu0 %v577
  %825 = vmatpush1.bf16.msra.mxu0 %v576
  %826 = vmatprep.subr.bf16.mxu0 %v581
  %827 = vmatpush1.bf16.msra.mxu0 %v580
  %828 = vmatprep.subr.bf16.mxu0 %v585
  %829 = vmatpush1.bf16.msra.mxu0 %v584
  %830 = vmatprep.subr.bf16.mxu0 %v589
  %831 = vmatpush1.bf16.msra.mxu0 %v588
  %832 = vmatprep.subr.bf16.mxu0 %v593
  %833 = vmatpush1.bf16.msra.mxu0 %v592
  %834 = vmatprep.subr.bf16.mxu0 %v597
  %835 = vmatpush1.bf16.msra.mxu0 %v596
  %836 = vmatprep.subr.bf16.mxu0 %v601
  %837 = vmatpush1.bf16.msra.mxu0 %v600
  %838 = vmatprep.subr.bf16.mxu0 %v605
  %839 = vmatpush1.bf16.msra.mxu0 %v604
  %840 = vmatprep.subr.bf16.mxu0 %v609
  %841 = vmatpush1.bf16.msra.mxu0 %v608
  %842 = vmatprep.subr.bf16.mxu0 %v613
  %843 = vmatpush1.bf16.msra.mxu0 %v612
  %844 = vmatprep.subr.bf16.mxu0 %v617
  %845 = vmatpush1.bf16.msra.mxu0 %v616
  %846 = vmatprep.subr.bf16.mxu0 %v621
  %847 = vmatpush1.bf16.msra.mxu0 %v620
  %848 = vmatprep.mubr.bf16.mxu0 %v169
  %849 = vmatmul.mubr.bf16.gmra.mrb[0].mxu0 %v168
  %v850 = vpop.f32.mrb[0].mxu0
  %v851 = vadd.f32 0.0, %v850
  %v852 = vpop.f32.mrb[0].mxu0
  %v853 = vadd.f32 0.0, %v852
  %v854 = vpop.f32.mrb[0].mxu0
  %v855 = vpop.f32.mrb[0].mxu0
  %856 = vdwg.mxu0
  %857 = vmatprep.subr.bf16.mxu0 %v625
  %858 = vmatpush1.bf16.msra.mxu0 %v624
  %859 = vmatprep.subr.bf16.mxu0 %v629
  %860 = vmatpush1.bf16.msra.mxu0 %v628
  %861 = vmatprep.subr.bf16.mxu0 %v633
  %862 = vmatpush1.bf16.msra.mxu0 %v632
  %863 = vmatprep.subr.bf16.mxu0 %v637
  %864 = vmatpush1.bf16.msra.mxu0 %v636
  %865 = vmatprep.subr.bf16.mxu0 %v641
  %866 = vmatpush1.bf16.msra.mxu0 %v640
  %867 = vmatprep.subr.bf16.mxu0 %v645
  %868 = vmatpush1.bf16.msra.mxu0 %v644
  %869 = vmatprep.subr.bf16.mxu0 %v649
  %870 = vmatpush1.bf16.msra.mxu0 %v648
  %871 = vmatprep.subr.bf16.mxu0 %v653
  %872 = vmatpush1.bf16.msra.mxu0 %v652
  %873 = vmatprep.subr.bf16.mxu0 %v657
  %874 = vmatpush1.bf16.msra.mxu0 %v656
  %875 = vmatprep.subr.bf16.mxu0 %v661
  %876 = vmatpush1.bf16.msra.mxu0 %v660
  %877 = vmatprep.subr.bf16.mxu0 %v665
  %878 = vmatpush1.bf16.msra.mxu0 %v664
  %879 = vmatprep.subr.bf16.mxu0 %v669
  %880 = vmatpush1.bf16.msra.mxu0 %v668
  %881 = vmatprep.subr.bf16.mxu0 %v673
  %882 = vmatpush1.bf16.msra.mxu0 %v672
  %883 = vmatprep.subr.bf16.mxu0 %v677
  %884 = vmatpush1.bf16.msra.mxu0 %v676
  %885 = vmatprep.subr.bf16.mxu0 %v681
  %886 = vmatpush1.bf16.msra.mxu0 %v680
  %887 = vmatprep.subr.bf16.mxu0 %v685
  %888 = vmatpush1.bf16.msra.mxu0 %v684
  %889 = vmatprep.mubr.bf16.mxu0 %v171
  %890 = vmatmul.mubr.bf16.gmra.mrb[0].mxu0 %v170
  %v891 = vpop.f32.mrb[0].mxu0
  %v892 = vadd.f32 %v851, %v891
  %v893 = vpop.f32.mrb[0].mxu0
  %v894 = vadd.f32 %v853, %v893
  %v895 = vpop.f32.mrb[0].mxu0
  %v896 = vpop.f32.mrb[0].mxu0
  %897 = vdwg.mxu0
  %898 = vmatprep.subr.bf16.mxu0 %v563
  %899 = vmatpush1.bf16.msra.mxu0 %v562
  %900 = vmatprep.subr.bf16.mxu0 %v567
  %901 = vmatpush1.bf16.msra.mxu0 %v566
  %902 = vmatprep.subr.bf16.mxu0 %v571
  %903 = vmatpush1.bf16.msra.mxu0 %v570
  %904 = vmatprep.subr.bf16.mxu0 %v575
  %905 = vmatpush1.bf16.msra.mxu0 %v574
  %906 = vmatprep.subr.bf16.mxu0 %v579
  %907 = vmatpush1.bf16.msra.mxu0 %v578
  %908 = vmatprep.subr.bf16.mxu0 %v583
  %909 = vmatpush1.bf16.msra.mxu0 %v582
  %910 = vmatprep.subr.bf16.mxu0 %v587
  %911 = vmatpush1.bf16.msra.mxu0 %v586
  %912 = vmatprep.subr.bf16.mxu0 %v591
  %913 = vmatpush1.bf16.msra.mxu0 %v590
  %914 = vmatprep.subr.bf16.mxu0 %v595
  %915 = vmatpush1.bf16.msra.mxu0 %v594
  %916 = vmatprep.subr.bf16.mxu0 %v599
  %917 = vmatpush1.bf16.msra.mxu0 %v598
  %918 = vmatprep.subr.bf16.mxu0 %v603
  %919 = vmatpush1.bf16.msra.mxu0 %v602
  %920 = vmatprep.subr.bf16.mxu0 %v607
  %921 = vmatpush1.bf16.msra.mxu0 %v606
  %922 = vmatprep.subr.bf16.mxu0 %v611
  %923 = vmatpush1.bf16.msra.mxu0 %v610
  %924 = vmatprep.subr.bf16.mxu0 %v615
  %925 = vmatpush1.bf16.msra.mxu0 %v614
  %926 = vmatprep.subr.bf16.mxu0 %v619
  %927 = vmatpush1.bf16.msra.mxu0 %v618
  %928 = vmatprep.subr.bf16.mxu0 %v623
  %929 = vmatpush1.bf16.msra.mxu0 %v622
  %930 = vmatprep.mubr.bf16.mxu0 %v169
  %931 = vmatmul.mubr.bf16.gmra.mrb[0].mxu0 %v168
  %v932 = vpop.f32.mrb[0].mxu0
  %v933 = vadd.f32 0.0, %v932
  %v934 = vpop.f32.mrb[0].mxu0
  %v935 = vadd.f32 0.0, %v934
  %v936 = vpop.f32.mrb[0].mxu0
  %v937 = vpop.f32.mrb[0].mxu0
  %938 = vdwg.mxu0
  %939 = vmatprep.subr.bf16.mxu0 %v627
  %940 = vmatpush1.bf16.msra.mxu0 %v626
  %941 = vmatprep.subr.bf16.mxu0 %v631
  %942 = vmatpush1.bf16.msra.mxu0 %v630
  %943 = vmatprep.subr.bf16.mxu0 %v635
  %944 = vmatpush1.bf16.msra.mxu0 %v634
  %945 = vmatprep.subr.bf16.mxu0 %v639
  %946 = vmatpush1.bf16.msra.mxu0 %v638
  %947 = vmatprep.subr.bf16.mxu0 %v643
  %948 = vmatpush1.bf16.msra.mxu0 %v642
  %949 = vmatprep.subr.bf16.mxu0 %v647
  %950 = vmatpush1.bf16.msra.mxu0 %v646
  %951 = vmatprep.subr.bf16.mxu0 %v651
  %952 = vmatpush1.bf16.msra.mxu0 %v650
  %953 = vmatprep.subr.bf16.mxu0 %v655
  %954 = vmatpush1.bf16.msra.mxu0 %v654
  %955 = vmatprep.subr.bf16.mxu0 %v659
  %956 = vmatpush1.bf16.msra.mxu0 %v658
  %957 = vmatprep.subr.bf16.mxu0 %v663
  %958 = vmatpush1.bf16.msra.mxu0 %v662
  %959 = vmatprep.subr.bf16.mxu0 %v667
  %960 = vmatpush1.bf16.msra.mxu0 %v666
  %961 = vmatprep.subr.bf16.mxu0 %v671
  %962 = vmatpush1.bf16.msra.mxu0 %v670
  %963 = vmatprep.subr.bf16.mxu0 %v675
  %964 = vmatpush1.bf16.msra.mxu0 %v674
  %965 = vmatprep.subr.bf16.mxu0 %v679
  %966 = vmatpush1.bf16.msra.mxu0 %v678
  %967 = vmatprep.subr.bf16.mxu0 %v683
  %968 = vmatpush1.bf16.msra.mxu0 %v682
  %969 = vmatprep.subr.bf16.mxu0 %v687
  %970 = vmatpush1.bf16.msra.mxu0 %v686
  %971 = vmatprep.mubr.bf16.mxu0 %v171
  %972 = vmatmul.mubr.bf16.gmra.mrb[0].mxu0 %v170
  %v973 = vpop.f32.mrb[0].mxu0
  %v974 = vadd.f32 %v933, %v973
  %v975 = vpop.f32.mrb[0].mxu0
  %v976 = vadd.f32 %v935, %v975
  %v977 = vpop.f32.mrb[0].mxu0
  %v978 = vpop.f32.mrb[0].mxu0
  %979 = vdwg.mxu0
  %v980 = vadd.f32 %v28, %v892
  %v981 = vadd.f32 %v29, %v894
  %v982 = vadd.f32 %v30, %v974
  %v983 = vadd.f32 %v31, %v976
  %984 = vst [vmem:[%s5] sm:$0xff] %v980
  %985 = vst [vmem:[%s5 + $0x8] sm:$0xff] %v981
  %986 = vst [vmem:[%s5 + $0x10] sm:$0xff] %v982
  %987 = vst [vmem:[%s5 + $0x18] sm:$0xff] %v983
  // Predicated region
  $region26: #{model_forward.4} parent=0 // pred_check
    %p988 = pneg %p20
  $region27: #{model_forward.4} parent=0 // pred_check_branch
    %990 = sbr.rel (%p988) target = $region29
  $region28: #{model_forward.4} parent=0 // pred_region
    %v991 = vld [vmem:[%s5] sm:$0xff]
    %v992 = vld [vmem:[%s5 + $0x8] sm:$0xff]
    %v993 = vld [vmem:[%s5 + $0x10] sm:$0xff]
    %v994 = vld [vmem:[%s5 + $0x18] sm:$0xff]
    %v995 = vld [vmem:[%s2] sm:$0xf]
    %v997 = vlaneseq
    %v998 = vshrl.u32 %v997, 7
    %v999 = vsub.s32 0, %v998
    %v1000 = vrot.slane %v995, %v999
    %v1001 = vlaneseq
    %v1002 = vshrl.u32 %v1001, 7
    %v1003 = vsub.s32 1, %v1002
    %v1004 = vrot.slane %v995, %v1003
    %v1005 = vlaneseq
    %v1006 = vshrl.u32 %v1005, 7
    %v1007 = vsub.s32 2, %v1006
    %v1008 = vrot.slane %v995, %v1007
    %v1009 = vlaneseq
    %v1010 = vshrl.u32 %v1009, 7
    %v1011 = vsub.s32 3, %v1010
    %v1012 = vrot.slane %v995, %v1011
    %v1017 = vadd.f32 %v991, %v1000
    %v1018 = vadd.f32 %v992, %v1004
    %v1019 = vadd.f32 %v993, %v1008
    %v1020 = vadd.f32 %v994, %v1012
    %v1021 = vld [vmem:[%s3] sm:$0xf]
    %v1023 = vlaneseq
    %v1024 = vshrl.u32 %v1023, 7
    %v1025 = vsub.s32 0, %v1024
    %v1026 = vrot.slane %v1021, %v1025
    %v1027 = vlaneseq
    %v1028 = vshrl.u32 %v1027, 7
    %v1029 = vsub.s32 1, %v1028
    %v1030 = vrot.slane %v1021, %v1029
    %v1031 = vlaneseq
    %v1032 = vshrl.u32 %v1031, 7
    %v1033 = vsub.s32 2, %v1032
    %v1034 = vrot.slane %v1021, %v1033
    %v1035 = vlaneseq
    %v1036 = vshrl.u32 %v1035, 7
    %v1037 = vsub.s32 3, %v1036
    %v1038 = vrot.slane %v1021, %v1037
    %v1043 = vmul.f32 %v1017, %v1026
    %v1044 = vmul.f32 %v1018, %v1030
    %v1045 = vmul.f32 %v1019, %v1034
    %v1046 = vmul.f32 %v1020, %v1038
    %v1047 = vld [vmem:[%s4] sm:$0xf]
    %v1049 = vlaneseq
    %v1050 = vshrl.u32 %v1049, 7
    %v1051 = vsub.s32 0, %v1050
    %v1052 = vrot.slane %v1047, %v1051
    %v1053 = vlaneseq
    %v1054 = vshrl.u32 %v1053, 7
    %v1055 = vsub.s32 1, %v1054
    %v1056 = vrot.slane %v1047, %v1055
    %v1057 = vlaneseq
    %v1058 = vshrl.u32 %v1057, 7
    %v1059 = vsub.s32 2, %v1058
    %v1060 = vrot.slane %v1047, %v1059
    %v1061 = vlaneseq
    %v1062 = vshrl.u32 %v1061, 7
    %v1063 = vsub.s32 3, %v1062
    %v1064 = vrot.slane %v1047, %v1063
    %v1069 = vadd.f32 %v1043, %v1052
    %v1070 = vadd.f32 %v1044, %v1056
    %v1071 = vadd.f32 %v1045, %v1060
    %v1072 = vadd.f32 %v1046, %v1064
    %v1073 = vmax.f32 %v1069, 0.0
    %v1074 = vmax.f32 %v1070, 0.0
    %v1075 = vmax.f32 %v1071, 0.0
    %v1076 = vmax.f32 %v1072, 0.0
    %1077 = vst [vmem:[%s5] sm:$0xff] %v1073
    %1078 = vst [vmem:[%s5 + $0x8] sm:$0xff] %v1074
    %1079 = vst [vmem:[%s5 + $0x10] sm:$0xff] %v1075
    %1080 = vst [vmem:[%s5 + $0x18] sm:$0xff] %v1076
  $region29: #{model_forward.4} parent=0 // pred_fallthru
    _
  // Predicated region
  $region30: #{model_forward.4} parent=0 // pred_check
    _
  $region31: #{model_forward.4} parent=0 // pred_check_branch
    %1082 = sbr.rel (0) target = $region33
  $region32: #{model_forward.4} parent=0 // pred_region
    _
  $region33: #{model_forward.4} parent=0 // pred_fallthru
    _
  // Predicated region
  $region34: #{model_forward.4} parent=0 // pred_check
    _
  $region35: #{model_forward.4} parent=0 // pred_check_branch
    %1084 = sbr.rel (0) target = $region37
  $region36: #{model_forward.4} parent=0 // pred_region
    _
  $region37: #{model_forward.4} parent=0 // pred_fallthru
    _

</llo_original>
